<compile_context>
chip_gen: v7x
topology: tpu7x:2x2x1
jax: 0.10.0
libtpu: 0.0.40
codegen_flags: <defaults>
</compile_context>

<pallas_src>
import functools

import jax
import jax.numpy as jnp
from jax.experimental import pallas as pl
from jax.experimental.pallas import tpu as pltpu

INPUT_SIZE = 2800
HIDDEN_SIZE = 128
NUM_CLASSES = 7

_LANE = 128
_SUBLANE = 8


def _round_up(x, m):
    return ((x + m - 1) // m) * m


def _mlp_kernel(x_ref, w1_ref, b1_ref, w2_ref, b2_ref, o_ref):
    # fc1: cast the streamed f32 x tile to bf16 in-kernel, f32 MXU accumulate.
    x = x_ref[...].astype(jnp.bfloat16)
    h = jnp.dot(x, w1_ref[...], preferred_element_type=jnp.float32)
    h = jnp.maximum(h + b1_ref[...], 0.0)            # bias + ReLU in f32
    # fc2: (bm, hidden) bf16 @ (hidden, 128-padded classes) bf16 -> f32.
    out = jnp.dot(h.astype(w2_ref.dtype), w2_ref[...],
                  preferred_element_type=jnp.float32)
    # Lane-dense (bm, 128) store; padded class columns are exact zeros + b2 pad.
    o_ref[...] = (out + b2_ref[...]).astype(o_ref.dtype)


def pack_params(w1, b1, w2, b2):
    """One-time repack of PyTorch-layout weights for the kernel.

    w1: (hidden, input), b1: (hidden,), w2: (classes, hidden), b2: (classes,).
    Returns (w1t, b1r, w2t, b2r): bf16 transposed weights (fc2 zero-padded to
    128 output lanes) and f32 row-vector biases.  Call once and reuse so the
    per-call path never re-reads / re-writes the weights.
    Note: operands are bf16-quantized (f32 MXU accumulation); the hidden
    activation is re-quantized to bf16 before fc2.
    """
    hidden, _ = w1.shape
    classes = w2.shape[0]
    np_ = _round_up(classes, _LANE)
    w1t = w1.T.astype(jnp.bfloat16)                                   # (in, hidden)
    w2t = jnp.zeros((hidden, np_), jnp.bfloat16).at[:, :classes].set(
        w2.T.astype(jnp.bfloat16))                                    # (hidden, Np)
    b1r = b1.reshape(1, hidden).astype(jnp.float32)
    b2r = jnp.zeros((1, np_), jnp.float32).at[:, :classes].set(
        b2.astype(jnp.float32))
    return w1t, b1r, w2t, b2r


@functools.partial(jax.jit, static_argnames=("classes", "block_m"))
def mlp_forward_packed(x, w1t, b1r, w2t, b2r, *, classes=NUM_CLASSES,
                       block_m=None):
    """Fused fc1 -> ReLU -> fc2 on pre-packed params.  x: (B, input) f32."""
    B, in_dim = x.shape
    hidden = w1t.shape[1]
    np_ = w2t.shape[1]

    if block_m is None:
        if B <= 16:
            block_m = _round_up(B, _SUBLANE)      # tiny batch: one small tile
        else:
            # >= 2 grid steps when possible (v7x megacore), rows capped at 1024.
            block_m = max(16, min(1024, _round_up(pl.cdiv(B, 2), 16)))
    grid_m = pl.cdiv(B, block_m)

    flops = 2 * B * (in_dim * hidden + hidden * np_)
    bytes_accessed = (B * in_dim * 4            # x (f32, streamed)
                      + in_dim * hidden * 2     # w1t (bf16, resident)
                      + hidden * np_ * 2        # w2t (bf16, resident)
                      + (hidden + np_) * 4      # biases
                      + B * np_ * 4)            # output (f32, lane-dense)

    out_padded = pl.pallas_call(
        _mlp_kernel,
        out_shape=jax.ShapeDtypeStruct((B, np_), jnp.float32),
        grid_spec=pltpu.PrefetchScalarGridSpec(
            num_scalar_prefetch=0,
            grid=(grid_m,),
            in_specs=[
                pl.BlockSpec((block_m, in_dim), lambda i: (i, 0)),  # x (streams)
                pl.BlockSpec((in_dim, hidden), lambda i: (0, 0)),   # w1t resident
                pl.BlockSpec((1, hidden), lambda i: (0, 0)),        # b1 resident
                pl.BlockSpec((hidden, np_), lambda i: (0, 0)),      # w2t resident
                pl.BlockSpec((1, np_), lambda i: (0, 0)),           # b2 resident
            ],
            out_specs=pl.BlockSpec((block_m, np_), lambda i: (i, 0)),
        ),
        compiler_params=pltpu.CompilerParams(
            dimension_semantics=("parallel",),
            # ~26 MB at block_m=1024 (2 x 11.5 MB x bufs + weights + out):
            # under this limit and under v7x's 64 MiB physical VMEM.
            vmem_limit_bytes=48 * 1024 * 1024,
        ),
        cost_estimate=pl.CostEstimate(flops=flops, transcendentals=0,
                                      bytes_accessed=bytes_accessed),
    )(x, w1t, b1r, w2t, b2r)

    # Slice away the class-lane padding (batch is never padded/copied).
    return out_padded[:, :classes]


def mlp_forward(x, w1, b1, w2, b2, *, block_m=None):
    """Convenience one-shot API (re-packs per call; prefer pack_params +
    mlp_forward_packed in steady state)."""
    packed = pack_params(w1, b1, w2, b2)
    return mlp_forward_packed(x, *packed, classes=w2.shape[0], block_m=block_m)


def _init_linear(key, out_features, in_features):
    # Deterministic init mimicking nn.Linear default: U(-1/sqrt(in), 1/sqrt(in))
    kw, kb = jax.random.split(key)
    bound = 1.0 / jnp.sqrt(jnp.float32(in_features))
    w = jax.random.uniform(kw, (out_features, in_features), jnp.float32, -bound, bound)
    b = jax.random.uniform(kb, (out_features,), jnp.float32, -bound, bound)
    return w, b


def _reference_bf16(x, w1, b1, w2, b2):
    # Mirrors kernel numerics: bf16 operands, f32 accumulation, bf16 hidden.
    xq = x.astype(jnp.bfloat16).astype(jnp.float32)
    w1q = w1.astype(jnp.bfloat16).astype(jnp.float32)
    w2q = w2.astype(jnp.bfloat16).astype(jnp.float32)
    h = jnp.maximum(xq @ w1q.T + b1, 0.0)
    return h.astype(jnp.bfloat16).astype(jnp.float32) @ w2q.T + b2


if __name__ == "__main__":
    key = jax.random.PRNGKey(0)
    kx, k1, k2, kx2 = jax.random.split(key, 4)

    w1, b1 = _init_linear(k1, HIDDEN_SIZE, INPUT_SIZE)
    w2, b2 = _init_linear(k2, NUM_CLASSES, HIDDEN_SIZE)
    packed = pack_params(w1, b1, w2, b2)   # one-time repack, reused below

    # Tiny batch: single grid step, exact tile.
    B = 8
    x = jax.random.normal(kx, (B, INPUT_SIZE), jnp.float32)
    out = jax.block_until_ready(mlp_forward_packed(x, *packed))
    assert out.shape == (B, NUM_CLASSES)
    assert jnp.allclose(out, _reference_bf16(x, w1, b1, w2, b2),
                        atol=1e-3, rtol=1e-3), "mismatch vs bf16 reference"
    ref_f32 = jnp.maximum(x @ w1.T + b1, 0.0) @ w2.T + b2
    assert jnp.allclose(out, ref_f32, atol=5e-2, rtol=5e-2), \
        "mismatch vs f32 reference"

    # Larger batch: 2 grid steps with a ragged (masked) boundary block.
    B2 = 40
    x2 = jax.random.normal(kx2, (B2, INPUT_SIZE), jnp.float32)
    out2 = jax.block_until_ready(mlp_forward_packed(x2, *packed))
    assert out2.shape == (B2, NUM_CLASSES)
    assert jnp.allclose(out2, _reference_bf16(x2, w1, b1, w2, b2),
                        atol=1e-3, rtol=1e-3), "mismatch vs bf16 reference (ragged)"

    print("KERNEL_OK")
</pallas_src>

<mosaic_0001>
module attributes {stable_mosaic.version = 11 : i64} {
  func.func @_mlp_kernel(%arg0: i32, %arg1: memref<8x2800xf32, #tpu.memory_space<vmem>>, %arg2: memref<2800x128xbf16, #tpu.memory_space<vmem>>, %arg3: memref<1x128xf32, #tpu.memory_space<vmem>>, %arg4: memref<128x128xbf16, #tpu.memory_space<vmem>>, %arg5: memref<1x128xf32, #tpu.memory_space<vmem>>, %arg6: memref<8x128xf32, #tpu.memory_space<vmem>>) attributes {dimension_semantics = [#tpu.dimension_semantics<parallel>], iteration_bounds = array<i64: 1>, scalar_prefetch = 0 : i64, scratch_operands = 0 : i64, tpu.core_type = #tpu.core_type<tc>, window_params = [{transform_indices = @transform_0, window_bounds = array<i64: 8, 2800>}, {pipeline_mode = #tpu.pipeline_mode<synchronous>, transform_indices = @transform_1, window_bounds = array<i64: 2800, 128>}, {pipeline_mode = #tpu.pipeline_mode<synchronous>, transform_indices = @transform_2, window_bounds = array<i64: 1, 128>}, {pipeline_mode = #tpu.pipeline_mode<synchronous>, transform_indices = @transform_3, window_bounds = array<i64: 128, 128>}, {pipeline_mode = #tpu.pipeline_mode<synchronous>, transform_indices = @transform_4, window_bounds = array<i64: 1, 128>}, {transform_indices = @transform_5, window_bounds = array<i64: 8, 128>}]} {
    %c0 = arith.constant 0 : index
    %c0_0 = arith.constant 0 : index
    %0 = vector.load %arg1[%c0, %c0_0] : memref<8x2800xf32, #tpu.memory_space<vmem>>, vector<8x2800xf32>
    %1 = arith.truncf %0 : vector<8x2800xf32> to vector<8x2800xbf16>
    %c0_1 = arith.constant 0 : index
    %c0_2 = arith.constant 0 : index
    %2 = vector.load %arg2[%c0_1, %c0_2] : memref<2800x128xbf16, #tpu.memory_space<vmem>>, vector<2800x128xbf16>
    %cst = arith.constant dense<0.000000e+00> : vector<8x128xf32>
    %3 = tpu.matmul %1, %2, %cst {dimension_numbers = #tpu.dot_dimension_numbers<[1], [0], [0], [1], [0, 0, 1, 1], [], []>} : vector<8x2800xbf16>, vector<2800x128xbf16>, vector<8x128xf32> -> vector<8x128xf32>
    %c0_3 = arith.constant 0 : index
    %c0_4 = arith.constant 0 : index
    %4 = vector.load %arg3[%c0_3, %c0_4] : memref<1x128xf32, #tpu.memory_space<vmem>>, vector<1x128xf32>
    %5 = vector.broadcast %4 : vector<1x128xf32> to vector<8x128xf32>
    %6 = arith.addf %3, %5 : vector<8x128xf32>
    %cst_5 = arith.constant 0.000000e+00 : f32
    %7 = vector.broadcast %cst_5 : f32 to vector<8x128xf32>
    %8 = arith.maximumf %6, %7 : vector<8x128xf32>
    %9 = arith.truncf %8 : vector<8x128xf32> to vector<8x128xbf16>
    %c0_6 = arith.constant 0 : index
    %c0_7 = arith.constant 0 : index
    %10 = vector.load %arg4[%c0_6, %c0_7] : memref<128x128xbf16, #tpu.memory_space<vmem>>, vector<128x128xbf16>
    %cst_8 = arith.constant dense<0.000000e+00> : vector<8x128xf32>
    %11 = tpu.matmul %9, %10, %cst_8 {dimension_numbers = #tpu.dot_dimension_numbers<[1], [0], [0], [1], [0, 0, 1, 1], [], []>} : vector<8x128xbf16>, vector<128x128xbf16>, vector<8x128xf32> -> vector<8x128xf32>
    %c0_9 = arith.constant 0 : index
    %c0_10 = arith.constant 0 : index
    %12 = vector.load %arg5[%c0_9, %c0_10] : memref<1x128xf32, #tpu.memory_space<vmem>>, vector<1x128xf32>
    %13 = vector.broadcast %12 : vector<1x128xf32> to vector<8x128xf32>
    %14 = arith.addf %11, %13 : vector<8x128xf32>
    %c0_11 = arith.constant 0 : index
    %c0_12 = arith.constant 0 : index
    %15 = vector.load %arg6[%c0_11, %c0_12] : memref<8x128xf32, #tpu.memory_space<vmem>>, vector<8x128xf32>
    tpu.vector_store %arg6[%c0_11, %c0_12], %14 {strides = array<i32>} : memref<8x128xf32, #tpu.memory_space<vmem>>, vector<8x128xf32>,
    return
  }
  func.func @transform_0(%arg0: i32) -> (i32, i32) {
    %c0_i32 = arith.constant 0 : i32
    %c0_i32_0 = arith.constant 0 : i32
    return %arg0, %c0_i32 : i32, i32
  }
  func.func @transform_1(%arg0: i32) -> (i32, i32) {
    %c0_i32 = arith.constant 0 : i32
    %c0_i32_0 = arith.constant 0 : i32
    %c0_i32_1 = arith.constant 0 : i32
    return %c0_i32, %c0_i32_0 : i32, i32
  }
  func.func @transform_2(%arg0: i32) -> (i32, i32) {
    %c0_i32 = arith.constant 0 : i32
    %c0_i32_0 = arith.constant 0 : i32
    %c0_i32_1 = arith.constant 0 : i32
    return %c0_i32, %c0_i32_0 : i32, i32
  }
  func.func @transform_3(%arg0: i32) -> (i32, i32) {
    %c0_i32 = arith.constant 0 : i32
    %c0_i32_0 = arith.constant 0 : i32
    %c0_i32_1 = arith.constant 0 : i32
    return %c0_i32, %c0_i32_0 : i32, i32
  }
  func.func @transform_4(%arg0: i32) -> (i32, i32) {
    %c0_i32 = arith.constant 0 : i32
    %c0_i32_0 = arith.constant 0 : i32
    %c0_i32_1 = arith.constant 0 : i32
    return %c0_i32, %c0_i32_0 : i32, i32
  }
  func.func @transform_5(%arg0: i32) -> (i32, i32) {
    %c0_i32 = arith.constant 0 : i32
    %c0_i32_0 = arith.constant 0 : i32
    return %arg0, %c0_i32 : i32, i32
  }
}

</mosaic_0001>

<llo_original>
// kernel: mlp_forward_packed.1
$region0: #{mlp_forward_packed.1}
  #allocation0 [shape = 'u32[]', space=smem, size = 0x4, offset = 0x4, fixed_abs, tag = 'smem constant byte address 0x4 - core index']
  #allocation1 [shape = 'u32[144,128]{1,0:T(1,128)}', space=vmem, size = 0x12000, scoped, tag = 'internal scratch']
  %s0 = inlined_call_operand.hbm [shape: f32[8,2800], index: 0, kind: input, shape index: {}]
  %s1 = inlined_call_operand.hbm [shape: bf16[2800,128], index: 1, kind: input, shape index: {}]
  %s2 = inlined_call_operand.vmem [shape: f32[1,128], index: 2, kind: input, shape index: {}]
  %s3 = inlined_call_operand.hbm [shape: bf16[128,128], index: 3, kind: input, shape index: {}]
  %s4 = inlined_call_operand.vmem [shape: f32[1,128], index: 4, kind: input, shape index: {}]
  %s5 = inlined_call_operand.hbm [shape: f32[8,128], index: 5, kind: output, shape index: {}]
  %s6 = sld [smem:[#allocation0]]
  $region42: #{mlp_forward_packed.1} parent=0
    _
  %s8 = ssub.s32 1, %s6
  %s9 = scalar_select 0, %s8, %s6
  $region1: #{mlp_forward_packed.1} parent=0
    #allocation2 [shape = 'u8[90112]{0}', space=vmem, size = 0x16000, scoped, tag = 'input window, operand 0, single buffered']
    #allocation3 [shape = 's32[1]{0}', space=sflag, size = 0x4, scoped, tag = 'scoped memory for mlp_forward_packed.1']
    #allocation4 [shape = 's32[1]{0}', space=sflag, size = 0x4, scoped, tag = 'scoped memory for mlp_forward_packed.1']
    #allocation5 [shape = 'u8[716800]{0}', space=vmem, size = 0xaf000, scoped, tag = 'input window, operand 1, single buffered']
    #allocation6 [shape = 's32[1]{0}', space=sflag, size = 0x4, scoped, tag = 'scoped memory for mlp_forward_packed.1']
    #allocation7 [shape = 'u8[32768]{0}', space=vmem, size = 0x8000, scoped, tag = 'input window, operand 3, single buffered']
    #allocation8 [shape = 'u8[4096]{0}', space=vmem, size = 0x1000, scoped, tag = 'output window, operand 0, single buffered']
    %10 = vsyncpa [#allocation3], 0
    %11 = vsyncpa [#allocation6], 0
    %12 = vsyncpa [#allocation4], 0
    // Predicated region
    $region2: #{mlp_forward_packed.1} parent=1 // pred_check
      _
    $region3: #{mlp_forward_packed.1} parent=1 // pred_check_branch
      %14 = sbr.rel (0) target = $region5
    $region4: #{mlp_forward_packed.1} parent=1 // pred_region
      %s16 = ssub.s32 2816, 2816
      %17 = vsyncadd [#allocation3], %s16
      %s19 = sshll.u32 [#allocation2], 4
      %s20 = int_to_ptr.vmem [resolvable:$true] %s19
      %22 = dma.hbm_to_vmem [thread:$0]  %s0, 2816, %s20, [#allocation3]
    $region5: #{mlp_forward_packed.1} parent=1 // pred_fallthru
      _
    // Predicated region
    $region6: #{mlp_forward_packed.1} parent=1 // pred_check
      _
    $region7: #{mlp_forward_packed.1} parent=1 // pred_check_branch
      %24 = sbr.rel (0) target = $region9
    $region8: #{mlp_forward_packed.1} parent=1 // pred_region
      %s26 = ssub.s32 22400, 22400
      %27 = vsyncadd [#allocation6], %s26
      %s28 = sshll.u32 [#allocation5], 4
      %s29 = int_to_ptr.vmem [resolvable:$true] %s28
      %34 = dma.hbm_to_vmem [thread:$0]  %s1, 22400, %s29, [#allocation6], 64, 64, 4
    $region9: #{mlp_forward_packed.1} parent=1 // pred_fallthru
      _
    // Predicated region
    $region10: #{mlp_forward_packed.1} parent=1 // pred_check
      _
    $region11: #{mlp_forward_packed.1} parent=1 // pred_check_branch
      %36 = sbr.rel (0) target = $region13
    $region12: #{mlp_forward_packed.1} parent=1 // pred_region
      _
    $region13: #{mlp_forward_packed.1} parent=1 // pred_fallthru
      _
    // Predicated region
    $region14: #{mlp_forward_packed.1} parent=1 // pred_check
      _
    $region15: #{mlp_forward_packed.1} parent=1 // pred_check_branch
      %38 = sbr.rel (0) target = $region17
    $region16: #{mlp_forward_packed.1} parent=1 // pred_region
      %s40 = ssub.s32 1024, 1024
      %41 = vsyncadd [#allocation6], %s40
      %s42 = sshll.u32 [#allocation7], 4
      %s43 = int_to_ptr.vmem [resolvable:$true] %s42
      %48 = dma.hbm_to_vmem [thread:$0]  %s3, 1024, %s43, [#allocation6], 64, 64, 4
    $region17: #{mlp_forward_packed.1} parent=1 // pred_fallthru
      _
    // Predicated region
    $region18: #{mlp_forward_packed.1} parent=1 // pred_check
      _
    $region19: #{mlp_forward_packed.1} parent=1 // pred_check_branch
      %50 = sbr.rel (0) target = $region21
    $region20: #{mlp_forward_packed.1} parent=1 // pred_region
      _
    $region21: #{mlp_forward_packed.1} parent=1 // pred_fallthru
      _
    // Predicated region
    $region22: #{mlp_forward_packed.1} parent=1 // pred_check
      _
    $region23: #{mlp_forward_packed.1} parent=1 // pred_check_branch
      %52 = sbr.rel (0) target = $region25
    $region24: #{mlp_forward_packed.1} parent=1 // pred_region
      %53 = dma.done [#allocation3], 2816
    $region25: #{mlp_forward_packed.1} parent=1 // pred_fallthru
      _
    // Predicated region
    $region26: #{mlp_forward_packed.1} parent=1 // pred_check
      _
    $region27: #{mlp_forward_packed.1} parent=1 // pred_check_branch
      %55 = sbr.rel (0) target = $region29
    $region28: #{mlp_forward_packed.1} parent=1 // pred_region
      %56 = dma.done [#allocation6], 22400
    $region29: #{mlp_forward_packed.1} parent=1 // pred_fallthru
      _
    // Predicated region
    $region30: #{mlp_forward_packed.1} parent=1 // pred_check
      _
    $region31: #{mlp_forward_packed.1} parent=1 // pred_check_branch
      %58 = sbr.rel (0) target = $region33
    $region32: #{mlp_forward_packed.1} parent=1 // pred_region
      %59 = dma.done [#allocation6], 1024
    $region33: #{mlp_forward_packed.1} parent=1 // pred_fallthru
      _
    %v61 = vld [vmem:[#allocation2] sm:$0xff]
    %v62 = vld [vmem:[#allocation2 + $0x8] sm:$0xff]
    %v63 = vld [vmem:[#allocation2 + $0x10] sm:$0xff]
    %v64 = vld [vmem:[#allocation2 + $0x18] sm:$0xff]
    %v65 = vld [vmem:[#allocation2 + $0x20] sm:$0xff]
    %v66 = vld [vmem:[#allocation2 + $0x28] sm:$0xff]
    %v67 = vld [vmem:[#allocation2 + $0x30] sm:$0xff]
    %v68 = vld [vmem:[#allocation2 + $0x38] sm:$0xff]
    %v69 = vld [vmem:[#allocation2 + $0x40] sm:$0xff]
    %v70 = vld [vmem:[#allocation2 + $0x48] sm:$0xff]
    %v71 = vld [vmem:[#allocation2 + $0x50] sm:$0xff]
    %v72 = vld [vmem:[#allocation2 + $0x58] sm:$0xff]
    %v73 = vld [vmem:[#allocation2 + $0x60] sm:$0xff]
    %v74 = vld [vmem:[#allocation2 + $0x68] sm:$0xff]
    %v75 = vld [vmem:[#allocation2 + $0x70] sm:$0xff]
    %v76 = vld [vmem:[#allocation2 + $0x78] sm:$0xff]
    %v77 = vld [vmem:[#allocation2 + $0x80] sm:$0xff]
    %v78 = vld [vmem:[#allocation2 + $0x88] sm:$0xff]
    %v79 = vld [vmem:[#allocation2 + $0x90] sm:$0xff]
    %v80 = vld [vmem:[#allocation2 + $0x98] sm:$0xff]
    %v81 = vld [vmem:[#allocation2 + $0xa0] sm:$0xff]
    %v82 = vld [vmem:[#allocation2 + $0xa8] sm:$0xff]
    %v83 = vpack.c.bf16 %v61, %v61
    %v84 = vpack.c.bf16 %v62, %v62
    %v85 = vpack.c.bf16 %v63, %v63
    %v86 = vpack.c.bf16 %v64, %v64
    %v87 = vpack.c.bf16 %v65, %v65
    %v88 = vpack.c.bf16 %v66, %v66
    %v89 = vpack.c.bf16 %v67, %v67
    %v90 = vpack.c.bf16 %v68, %v68
    %v91 = vpack.c.bf16 %v69, %v69
    %v92 = vpack.c.bf16 %v70, %v70
    %v93 = vpack.c.bf16 %v71, %v71
    %v94 = vpack.c.bf16 %v72, %v72
    %v95 = vpack.c.bf16 %v73, %v73
    %v96 = vpack.c.bf16 %v74, %v74
    %v97 = vpack.c.bf16 %v75, %v75
    %v98 = vpack.c.bf16 %v76, %v76
    %v99 = vpack.c.bf16 %v77, %v77
    %v100 = vpack.c.bf16 %v78, %v78
    %v101 = vpack.c.bf16 %v79, %v79
    %v102 = vpack.c.bf16 %v80, %v80
    %v103 = vpack.c.bf16 %v81, %v81
    %v104 = vpack.c.bf16 %v82, %v82
    %v105 = vld [vmem:[#allocation5] sm:$0xf]
    %v106 = vld [vmem:[#allocation5 + $0x4] sm:$0xf]
    %v107 = vld [vmem:[#allocation5 + $0x8] sm:$0xf]
    %v108 = vld [vmem:[#allocation5 + $0xc] sm:$0xf]
    %v109 = vld [vmem:[#allocation5 + $0x10] sm:$0xf]
    %v110 = vld [vmem:[#allocation5 + $0x14] sm:$0xf]
    %v111 = vld [vmem:[#allocation5 + $0x18] sm:$0xf]
    %v112 = vld [vmem:[#allocation5 + $0x1c] sm:$0xf]
    %v113 = vld [vmem:[#allocation5 + $0x20] sm:$0xf]
    %v114 = vld [vmem:[#allocation5 + $0x24] sm:$0xf]
    %v115 = vld [vmem:[#allocation5 + $0x28] sm:$0xf]
    %v116 = vld [vmem:[#allocation5 + $0x2c] sm:$0xf]
    %v117 = vld [vmem:[#allocation5 + $0x30] sm:$0xf]
    %v118 = vld [vmem:[#allocation5 + $0x34] sm:$0xf]
    %v119 = vld [vmem:[#allocation5 + $0x38] sm:$0xf]
    %v120 = vld [vmem:[#allocation5 + $0x3c] sm:$0xf]
    %v121 = vld [vmem:[#allocation5 + $0x40] sm:$0xf]
    %v122 = vld [vmem:[#allocation5 + $0x44] sm:$0xf]
    %v123 = vld [vmem:[#allocation5 + $0x48] sm:$0xf]
    %v124 = vld [vmem:[#allocation5 + $0x4c] sm:$0xf]
    %v125 = vld [vmem:[#allocation5 + $0x50] sm:$0xf]
    %v126 = vld [vmem:[#allocation5 + $0x54] sm:$0xf]
    %v127 = vld [vmem:[#allocation5 + $0x58] sm:$0xf]
    %v128 = vld [vmem:[#allocation5 + $0x5c] sm:$0xf]
    %v129 = vld [vmem:[#allocation5 + $0x60] sm:$0xf]
    %v130 = vld [vmem:[#allocation5 + $0x64] sm:$0xf]
    %v131 = vld [vmem:[#allocation5 + $0x68] sm:$0xf]
    %v132 = vld [vmem:[#allocation5 + $0x6c] sm:$0xf]
    %v133 = vld [vmem:[#allocation5 + $0x70] sm:$0xf]
    %v134 = vld [vmem:[#allocation5 + $0x74] sm:$0xf]
    %v135 = vld [vmem:[#allocation5 + $0x78] sm:$0xf]
    %v136 = vld [vmem:[#allocation5 + $0x7c] sm:$0xf]
    %v137 = vld [vmem:[#allocation5 + $0x80] sm:$0xf]
    %v138 = vld [vmem:[#allocation5 + $0x84] sm:$0xf]
    %v139 = vld [vmem:[#allocation5 + $0x88] sm:$0xf]
    %v140 = vld [vmem:[#allocation5 + $0x8c] sm:$0xf]
    %v141 = vld [vmem:[#allocation5 + $0x90] sm:$0xf]
    %v142 = vld [vmem:[#allocation5 + $0x94] sm:$0xf]
    %v143 = vld [vmem:[#allocation5 + $0x98] sm:$0xf]
    %v144 = vld [vmem:[#allocation5 + $0x9c] sm:$0xf]
    %v145 = vld [vmem:[#allocation5 + $0xa0] sm:$0xf]
    %v146 = vld [vmem:[#allocation5 + $0xa4] sm:$0xf]
    %v147 = vld [vmem:[#allocation5 + $0xa8] sm:$0xf]
    %v148 = vld [vmem:[#allocation5 + $0xac] sm:$0xf]
    %v149 = vld [vmem:[#allocation5 + $0xb0] sm:$0xf]
    %v150 = vld [vmem:[#allocation5 + $0xb4] sm:$0xf]
    %v151 = vld [vmem:[#allocation5 + $0xb8] sm:$0xf]
    %v152 = vld [vmem:[#allocation5 + $0xbc] sm:$0xf]
    %v153 = vld [vmem:[#allocation5 + $0xc0] sm:$0xf]
    %v154 = vld [vmem:[#allocation5 + $0xc4] sm:$0xf]
    %v155 = vld [vmem:[#allocation5 + $0xc8] sm:$0xf]
    %v156 = vld [vmem:[#allocation5 + $0xcc] sm:$0xf]
    %v157 = vld [vmem:[#allocation5 + $0xd0] sm:$0xf]
    %v158 = vld [vmem:[#allocation5 + $0xd4] sm:$0xf]
    %v159 = vld [vmem:[#allocation5 + $0xd8] sm:$0xf]
    %v160 = vld [vmem:[#allocation5 + $0xdc] sm:$0xf]
    %v161 = vld [vmem:[#allocation5 + $0xe0] sm:$0xf]
    %v162 = vld [vmem:[#allocation5 + $0xe4] sm:$0xf]
    %v163 = vld [vmem:[#allocation5 + $0xe8] sm:$0xf]
    %v164 = vld [vmem:[#allocation5 + $0xec] sm:$0xf]
    %v165 = vld [vmem:[#allocation5 + $0xf0] sm:$0xf]
    %v166 = vld [vmem:[#allocation5 + $0xf4] sm:$0xf]
    %v167 = vld [vmem:[#allocation5 + $0xf8] sm:$0xf]
    %v168 = vld [vmem:[#allocation5 + $0xfc] sm:$0xf]
    %v169 = vld [vmem:[#allocation5 + $0x100] sm:$0xf]
    %v170 = vld [vmem:[#allocation5 + $0x104] sm:$0xf]
    %v171 = vld [vmem:[#allocation5 + $0x108] sm:$0xf]
    %v172 = vld [vmem:[#allocation5 + $0x10c] sm:$0xf]
    %v173 = vld [vmem:[#allocation5 + $0x110] sm:$0xf]
    %v174 = vld [vmem:[#allocation5 + $0x114] sm:$0xf]
    %v175 = vld [vmem:[#allocation5 + $0x118] sm:$0xf]
    %v176 = vld [vmem:[#allocation5 + $0x11c] sm:$0xf]
    %v177 = vld [vmem:[#allocation5 + $0x120] sm:$0xf]
    %v178 = vld [vmem:[#allocation5 + $0x124] sm:$0xf]
    %v179 = vld [vmem:[#allocation5 + $0x128] sm:$0xf]
    %v180 = vld [vmem:[#allocation5 + $0x12c] sm:$0xf]
    %v181 = vld [vmem:[#allocation5 + $0x130] sm:$0xf]
    %v182 = vld [vmem:[#allocation5 + $0x134] sm:$0xf]
    %v183 = vld [vmem:[#allocation5 + $0x138] sm:$0xf]
    %v184 = vld [vmem:[#allocation5 + $0x13c] sm:$0xf]
    %v185 = vld [vmem:[#allocation5 + $0x140] sm:$0xf]
    %v186 = vld [vmem:[#allocation5 + $0x144] sm:$0xf]
    %v187 = vld [vmem:[#allocation5 + $0x148] sm:$0xf]
    %v188 = vld [vmem:[#allocation5 + $0x14c] sm:$0xf]
    %v189 = vld [vmem:[#allocation5 + $0x150] sm:$0xf]
    %v190 = vld [vmem:[#allocation5 + $0x154] sm:$0xf]
    %v191 = vld [vmem:[#allocation5 + $0x158] sm:$0xf]
    %v192 = vld [vmem:[#allocation5 + $0x15c] sm:$0xf]
    %v193 = vld [vmem:[#allocation5 + $0x160] sm:$0xf]
    %v194 = vld [vmem:[#allocation5 + $0x164] sm:$0xf]
    %v195 = vld [vmem:[#allocation5 + $0x168] sm:$0xf]
    %v196 = vld [vmem:[#allocation5 + $0x16c] sm:$0xf]
    %v197 = vld [vmem:[#allocation5 + $0x170] sm:$0xf]
    %v198 = vld [vmem:[#allocation5 + $0x174] sm:$0xf]
    %v199 = vld [vmem:[#allocation5 + $0x178] sm:$0xf]
    %v200 = vld [vmem:[#allocation5 + $0x17c] sm:$0xf]
    %v201 = vld [vmem:[#allocation5 + $0x180] sm:$0xf]
    %v202 = vld [vmem:[#allocation5 + $0x184] sm:$0xf]
    %v203 = vld [vmem:[#allocation5 + $0x188] sm:$0xf]
    %v204 = vld [vmem:[#allocation5 + $0x18c] sm:$0xf]
    %v205 = vld [vmem:[#allocation5 + $0x190] sm:$0xf]
    %v206 = vld [vmem:[#allocation5 + $0x194] sm:$0xf]
    %v207 = vld [vmem:[#allocation5 + $0x198] sm:$0xf]
    %v208 = vld [vmem:[#allocation5 + $0x19c] sm:$0xf]
    %v209 = vld [vmem:[#allocation5 + $0x1a0] sm:$0xf]
    %v210 = vld [vmem:[#allocation5 + $0x1a4] sm:$0xf]
    %v211 = vld [vmem:[#allocation5 + $0x1a8] sm:$0xf]
    %v212 = vld [vmem:[#allocation5 + $0x1ac] sm:$0xf]
    %v213 = vld [vmem:[#allocation5 + $0x1b0] sm:$0xf]
    %v214 = vld [vmem:[#allocation5 + $0x1b4] sm:$0xf]
    %v215 = vld [vmem:[#allocation5 + $0x1b8] sm:$0xf]
    %v216 = vld [vmem:[#allocation5 + $0x1bc] sm:$0xf]
    %v217 = vld [vmem:[#allocation5 + $0x1c0] sm:$0xf]
    %v218 = vld [vmem:[#allocation5 + $0x1c4] sm:$0xf]
    %v219 = vld [vmem:[#allocation5 + $0x1c8] sm:$0xf]
    %v220 = vld [vmem:[#allocation5 + $0x1cc] sm:$0xf]
    %v221 = vld [vmem:[#allocation5 + $0x1d0] sm:$0xf]
    %v222 = vld [vmem:[#allocation5 + $0x1d4] sm:$0xf]
    %v223 = vld [vmem:[#allocation5 + $0x1d8] sm:$0xf]
    %v224 = vld [vmem:[#allocation5 + $0x1dc] sm:$0xf]
    %v225 = vld [vmem:[#allocation5 + $0x1e0] sm:$0xf]
    %v226 = vld [vmem:[#allocation5 + $0x1e4] sm:$0xf]
    %v227 = vld [vmem:[#allocation5 + $0x1e8] sm:$0xf]
    %v228 = vld [vmem:[#allocation5 + $0x1ec] sm:$0xf]
    %v229 = vld [vmem:[#allocation5 + $0x1f0] sm:$0xf]
    %v230 = vld [vmem:[#allocation5 + $0x1f4] sm:$0xf]
    %v231 = vld [vmem:[#allocation5 + $0x1f8] sm:$0xf]
    %v232 = vld [vmem:[#allocation5 + $0x1fc] sm:$0xf]
    %v233 = vld [vmem:[#allocation5 + $0x200] sm:$0xf]
    %v234 = vld [vmem:[#allocation5 + $0x204] sm:$0xf]
    %v235 = vld [vmem:[#allocation5 + $0x208] sm:$0xf]
    %v236 = vld [vmem:[#allocation5 + $0x20c] sm:$0xf]
    %v237 = vld [vmem:[#allocation5 + $0x210] sm:$0xf]
    %v238 = vld [vmem:[#allocation5 + $0x214] sm:$0xf]
    %v239 = vld [vmem:[#allocation5 + $0x218] sm:$0xf]
    %v240 = vld [vmem:[#allocation5 + $0x21c] sm:$0xf]
    %v241 = vld [vmem:[#allocation5 + $0x220] sm:$0xf]
    %v242 = vld [vmem:[#allocation5 + $0x224] sm:$0xf]
    %v243 = vld [vmem:[#allocation5 + $0x228] sm:$0xf]
    %v244 = vld [vmem:[#allocation5 + $0x22c] sm:$0xf]
    %v245 = vld [vmem:[#allocation5 + $0x230] sm:$0xf]
    %v246 = vld [vmem:[#allocation5 + $0x234] sm:$0xf]
    %v247 = vld [vmem:[#allocation5 + $0x238] sm:$0xf]
    %v248 = vld [vmem:[#allocation5 + $0x23c] sm:$0xf]
    %v249 = vld [vmem:[#allocation5 + $0x240] sm:$0xf]
    %v250 = vld [vmem:[#allocation5 + $0x244] sm:$0xf]
    %v251 = vld [vmem:[#allocation5 + $0x248] sm:$0xf]
    %v252 = vld [vmem:[#allocation5 + $0x24c] sm:$0xf]
    %v253 = vld [vmem:[#allocation5 + $0x250] sm:$0xf]
    %v254 = vld [vmem:[#allocation5 + $0x254] sm:$0xf]
    %v255 = vld [vmem:[#allocation5 + $0x258] sm:$0xf]
    %v256 = vld [vmem:[#allocation5 + $0x25c] sm:$0xf]
    %v257 = vld [vmem:[#allocation5 + $0x260] sm:$0xf]
    %v258 = vld [vmem:[#allocation5 + $0x264] sm:$0xf]
    %v259 = vld [vmem:[#allocation5 + $0x268] sm:$0xf]
    %v260 = vld [vmem:[#allocation5 + $0x26c] sm:$0xf]
    %v261 = vld [vmem:[#allocation5 + $0x270] sm:$0xf]
    %v262 = vld [vmem:[#allocation5 + $0x274] sm:$0xf]
    %v263 = vld [vmem:[#allocation5 + $0x278] sm:$0xf]
    %v264 = vld [vmem:[#allocation5 + $0x27c] sm:$0xf]
    %v265 = vld [vmem:[#allocation5 + $0x280] sm:$0xf]
    %v266 = vld [vmem:[#allocation5 + $0x284] sm:$0xf]
    %v267 = vld [vmem:[#allocation5 + $0x288] sm:$0xf]
    %v268 = vld [vmem:[#allocation5 + $0x28c] sm:$0xf]
    %v269 = vld [vmem:[#allocation5 + $0x290] sm:$0xf]
    %v270 = vld [vmem:[#allocation5 + $0x294] sm:$0xf]
    %v271 = vld [vmem:[#allocation5 + $0x298] sm:$0xf]
    %v272 = vld [vmem:[#allocation5 + $0x29c] sm:$0xf]
    %v273 = vld [vmem:[#allocation5 + $0x2a0] sm:$0xf]
    %v274 = vld [vmem:[#allocation5 + $0x2a4] sm:$0xf]
    %v275 = vld [vmem:[#allocation5 + $0x2a8] sm:$0xf]
    %v276 = vld [vmem:[#allocation5 + $0x2ac] sm:$0xf]
    %v277 = vld [vmem:[#allocation5 + $0x2b0] sm:$0xf]
    %v278 = vld [vmem:[#allocation5 + $0x2b4] sm:$0xf]
    %v279 = vld [vmem:[#allocation5 + $0x2b8] sm:$0xf]
    %v280 = vld [vmem:[#allocation5 + $0x2bc] sm:$0xf]
    %v281 = vld [vmem:[#allocation5 + $0x2c0] sm:$0xf]
    %v282 = vld [vmem:[#allocation5 + $0x2c4] sm:$0xf]
    %v283 = vld [vmem:[#allocation5 + $0x2c8] sm:$0xf]
    %v284 = vld [vmem:[#allocation5 + $0x2cc] sm:$0xf]
    %v285 = vld [vmem:[#allocation5 + $0x2d0] sm:$0xf]
    %v286 = vld [vmem:[#allocation5 + $0x2d4] sm:$0xf]
    %v287 = vld [vmem:[#allocation5 + $0x2d8] sm:$0xf]
    %v288 = vld [vmem:[#allocation5 + $0x2dc] sm:$0xf]
    %v289 = vld [vmem:[#allocation5 + $0x2e0] sm:$0xf]
    %v290 = vld [vmem:[#allocation5 + $0x2e4] sm:$0xf]
    %v291 = vld [vmem:[#allocation5 + $0x2e8] sm:$0xf]
    %v292 = vld [vmem:[#allocation5 + $0x2ec] sm:$0xf]
    %v293 = vld [vmem:[#allocation5 + $0x2f0] sm:$0xf]
    %v294 = vld [vmem:[#allocation5 + $0x2f4] sm:$0xf]
    %v295 = vld [vmem:[#allocation5 + $0x2f8] sm:$0xf]
    %v296 = vld [vmem:[#allocation5 + $0x2fc] sm:$0xf]
    %v297 = vld [vmem:[#allocation5 + $0x300] sm:$0xf]
    %v298 = vld [vmem:[#allocation5 + $0x304] sm:$0xf]
    %v299 = vld [vmem:[#allocation5 + $0x308] sm:$0xf]
    %v300 = vld [vmem:[#allocation5 + $0x30c] sm:$0xf]
    %v301 = vld [vmem:[#allocation5 + $0x310] sm:$0xf]
    %v302 = vld [vmem:[#allocation5 + $0x314] sm:$0xf]
    %v303 = vld [vmem:[#allocation5 + $0x318] sm:$0xf]
    %v304 = vld [vmem:[#allocation5 + $0x31c] sm:$0xf]
    %v305 = vld [vmem:[#allocation5 + $0x320] sm:$0xf]
    %v306 = vld [vmem:[#allocation5 + $0x324] sm:$0xf]
    %v307 = vld [vmem:[#allocation5 + $0x328] sm:$0xf]
    %v308 = vld [vmem:[#allocation5 + $0x32c] sm:$0xf]
    %v309 = vld [vmem:[#allocation5 + $0x330] sm:$0xf]
    %v310 = vld [vmem:[#allocation5 + $0x334] sm:$0xf]
    %v311 = vld [vmem:[#allocation5 + $0x338] sm:$0xf]
    %v312 = vld [vmem:[#allocation5 + $0x33c] sm:$0xf]
    %v313 = vld [vmem:[#allocation5 + $0x340] sm:$0xf]
    %v314 = vld [vmem:[#allocation5 + $0x344] sm:$0xf]
    %v315 = vld [vmem:[#allocation5 + $0x348] sm:$0xf]
    %v316 = vld [vmem:[#allocation5 + $0x34c] sm:$0xf]
    %v317 = vld [vmem:[#allocation5 + $0x350] sm:$0xf]
    %v318 = vld [vmem:[#allocation5 + $0x354] sm:$0xf]
    %v319 = vld [vmem:[#allocation5 + $0x358] sm:$0xf]
    %v320 = vld [vmem:[#allocation5 + $0x35c] sm:$0xf]
    %v321 = vld [vmem:[#allocation5 + $0x360] sm:$0xf]
    %v322 = vld [vmem:[#allocation5 + $0x364] sm:$0xf]
    %v323 = vld [vmem:[#allocation5 + $0x368] sm:$0xf]
    %v324 = vld [vmem:[#allocation5 + $0x36c] sm:$0xf]
    %v325 = vld [vmem:[#allocation5 + $0x370] sm:$0xf]
    %v326 = vld [vmem:[#allocation5 + $0x374] sm:$0xf]
    %v327 = vld [vmem:[#allocation5 + $0x378] sm:$0xf]
    %v328 = vld [vmem:[#allocation5 + $0x37c] sm:$0xf]
    %v329 = vld [vmem:[#allocation5 + $0x380] sm:$0xf]
    %v330 = vld [vmem:[#allocation5 + $0x384] sm:$0xf]
    %v331 = vld [vmem:[#allocation5 + $0x388] sm:$0xf]
    %v332 = vld [vmem:[#allocation5 + $0x38c] sm:$0xf]
    %v333 = vld [vmem:[#allocation5 + $0x390] sm:$0xf]
    %v334 = vld [vmem:[#allocation5 + $0x394] sm:$0xf]
    %v335 = vld [vmem:[#allocation5 + $0x398] sm:$0xf]
    %v336 = vld [vmem:[#allocation5 + $0x39c] sm:$0xf]
    %v337 = vld [vmem:[#allocation5 + $0x3a0] sm:$0xf]
    %v338 = vld [vmem:[#allocation5 + $0x3a4] sm:$0xf]
    %v339 = vld [vmem:[#allocation5 + $0x3a8] sm:$0xf]
    %v340 = vld [vmem:[#allocation5 + $0x3ac] sm:$0xf]
    %v341 = vld [vmem:[#allocation5 + $0x3b0] sm:$0xf]
    %v342 = vld [vmem:[#allocation5 + $0x3b4] sm:$0xf]
    %v343 = vld [vmem:[#allocation5 + $0x3b8] sm:$0xf]
    %v344 = vld [vmem:[#allocation5 + $0x3bc] sm:$0xf]
    %v345 = vld [vmem:[#allocation5 + $0x3c0] sm:$0xf]
    %v346 = vld [vmem:[#allocation5 + $0x3c4] sm:$0xf]
    %v347 = vld [vmem:[#allocation5 + $0x3c8] sm:$0xf]
    %v348 = vld [vmem:[#allocation5 + $0x3cc] sm:$0xf]
    %v349 = vld [vmem:[#allocation5 + $0x3d0] sm:$0xf]
    %v350 = vld [vmem:[#allocation5 + $0x3d4] sm:$0xf]
    %v351 = vld [vmem:[#allocation5 + $0x3d8] sm:$0xf]
    %v352 = vld [vmem:[#allocation5 + $0x3dc] sm:$0xf]
    %v353 = vld [vmem:[#allocation5 + $0x3e0] sm:$0xf]
    %v354 = vld [vmem:[#allocation5 + $0x3e4] sm:$0xf]
    %v355 = vld [vmem:[#allocation5 + $0x3e8] sm:$0xf]
    %v356 = vld [vmem:[#allocation5 + $0x3ec] sm:$0xf]
    %v357 = vld [vmem:[#allocation5 + $0x3f0] sm:$0xf]
    %v358 = vld [vmem:[#allocation5 + $0x3f4] sm:$0xf]
    %v359 = vld [vmem:[#allocation5 + $0x3f8] sm:$0xf]
    %v360 = vld [vmem:[#allocation5 + $0x3fc] sm:$0xf]
    %v361 = vld [vmem:[#allocation5 + $0x400] sm:$0xf]
    %v362 = vld [vmem:[#allocation5 + $0x404] sm:$0xf]
    %v363 = vld [vmem:[#allocation5 + $0x408] sm:$0xf]
    %v364 = vld [vmem:[#allocation5 + $0x40c] sm:$0xf]
    %v365 = vld [vmem:[#allocation5 + $0x410] sm:$0xf]
    %v366 = vld [vmem:[#allocation5 + $0x414] sm:$0xf]
    %v367 = vld [vmem:[#allocation5 + $0x418] sm:$0xf]
    %v368 = vld [vmem:[#allocation5 + $0x41c] sm:$0xf]
    %v369 = vld [vmem:[#allocation5 + $0x420] sm:$0xf]
    %v370 = vld [vmem:[#allocation5 + $0x424] sm:$0xf]
    %v371 = vld [vmem:[#allocation5 + $0x428] sm:$0xf]
    %v372 = vld [vmem:[#allocation5 + $0x42c] sm:$0xf]
    %v373 = vld [vmem:[#allocation5 + $0x430] sm:$0xf]
    %v374 = vld [vmem:[#allocation5 + $0x434] sm:$0xf]
    %v375 = vld [vmem:[#allocation5 + $0x438] sm:$0xf]
    %v376 = vld [vmem:[#allocation5 + $0x43c] sm:$0xf]
    %v377 = vld [vmem:[#allocation5 + $0x440] sm:$0xf]
    %v378 = vld [vmem:[#allocation5 + $0x444] sm:$0xf]
    %v379 = vld [vmem:[#allocation5 + $0x448] sm:$0xf]
    %v380 = vld [vmem:[#allocation5 + $0x44c] sm:$0xf]
    %v381 = vld [vmem:[#allocation5 + $0x450] sm:$0xf]
    %v382 = vld [vmem:[#allocation5 + $0x454] sm:$0xf]
    %v383 = vld [vmem:[#allocation5 + $0x458] sm:$0xf]
    %v384 = vld [vmem:[#allocation5 + $0x45c] sm:$0xf]
    %v385 = vld [vmem:[#allocation5 + $0x460] sm:$0xf]
    %v386 = vld [vmem:[#allocation5 + $0x464] sm:$0xf]
    %v387 = vld [vmem:[#allocation5 + $0x468] sm:$0xf]
    %v388 = vld [vmem:[#allocation5 + $0x46c] sm:$0xf]
    %v389 = vld [vmem:[#allocation5 + $0x470] sm:$0xf]
    %v390 = vld [vmem:[#allocation5 + $0x474] sm:$0xf]
    %v391 = vld [vmem:[#allocation5 + $0x478] sm:$0xf]
    %v392 = vld [vmem:[#allocation5 + $0x47c] sm:$0xf]
    %v393 = vld [vmem:[#allocation5 + $0x480] sm:$0xf]
    %v394 = vld [vmem:[#allocation5 + $0x484] sm:$0xf]
    %v395 = vld [vmem:[#allocation5 + $0x488] sm:$0xf]
    %v396 = vld [vmem:[#allocation5 + $0x48c] sm:$0xf]
    %v397 = vld [vmem:[#allocation5 + $0x490] sm:$0xf]
    %v398 = vld [vmem:[#allocation5 + $0x494] sm:$0xf]
    %v399 = vld [vmem:[#allocation5 + $0x498] sm:$0xf]
    %v400 = vld [vmem:[#allocation5 + $0x49c] sm:$0xf]
    %v401 = vld [vmem:[#allocation5 + $0x4a0] sm:$0xf]
    %v402 = vld [vmem:[#allocation5 + $0x4a4] sm:$0xf]
    %v403 = vld [vmem:[#allocation5 + $0x4a8] sm:$0xf]
    %v404 = vld [vmem:[#allocation5 + $0x4ac] sm:$0xf]
    %v405 = vld [vmem:[#allocation5 + $0x4b0] sm:$0xf]
    %v406 = vld [vmem:[#allocation5 + $0x4b4] sm:$0xf]
    %v407 = vld [vmem:[#allocation5 + $0x4b8] sm:$0xf]
    %v408 = vld [vmem:[#allocation5 + $0x4bc] sm:$0xf]
    %v409 = vld [vmem:[#allocation5 + $0x4c0] sm:$0xf]
    %v410 = vld [vmem:[#allocation5 + $0x4c4] sm:$0xf]
    %v411 = vld [vmem:[#allocation5 + $0x4c8] sm:$0xf]
    %v412 = vld [vmem:[#allocation5 + $0x4cc] sm:$0xf]
    %v413 = vld [vmem:[#allocation5 + $0x4d0] sm:$0xf]
    %v414 = vld [vmem:[#allocation5 + $0x4d4] sm:$0xf]
    %v415 = vld [vmem:[#allocation5 + $0x4d8] sm:$0xf]
    %v416 = vld [vmem:[#allocation5 + $0x4dc] sm:$0xf]
    %v417 = vld [vmem:[#allocation5 + $0x4e0] sm:$0xf]
    %v418 = vld [vmem:[#allocation5 + $0x4e4] sm:$0xf]
    %v419 = vld [vmem:[#allocation5 + $0x4e8] sm:$0xf]
    %v420 = vld [vmem:[#allocation5 + $0x4ec] sm:$0xf]
    %v421 = vld [vmem:[#allocation5 + $0x4f0] sm:$0xf]
    %v422 = vld [vmem:[#allocation5 + $0x4f4] sm:$0xf]
    %v423 = vld [vmem:[#allocation5 + $0x4f8] sm:$0xf]
    %v424 = vld [vmem:[#allocation5 + $0x4fc] sm:$0xf]
    %v425 = vld [vmem:[#allocation5 + $0x500] sm:$0xf]
    %v426 = vld [vmem:[#allocation5 + $0x504] sm:$0xf]
    %v427 = vld [vmem:[#allocation5 + $0x508] sm:$0xf]
    %v428 = vld [vmem:[#allocation5 + $0x50c] sm:$0xf]
    %v429 = vld [vmem:[#allocation5 + $0x510] sm:$0xf]
    %v430 = vld [vmem:[#allocation5 + $0x514] sm:$0xf]
    %v431 = vld [vmem:[#allocation5 + $0x518] sm:$0xf]
    %v432 = vld [vmem:[#allocation5 + $0x51c] sm:$0xf]
    %v433 = vld [vmem:[#allocation5 + $0x520] sm:$0xf]
    %v434 = vld [vmem:[#allocation5 + $0x524] sm:$0xf]
    %v435 = vld [vmem:[#allocation5 + $0x528] sm:$0xf]
    %v436 = vld [vmem:[#allocation5 + $0x52c] sm:$0xf]
    %v437 = vld [vmem:[#allocation5 + $0x530] sm:$0xf]
    %v438 = vld [vmem:[#allocation5 + $0x534] sm:$0xf]
    %v439 = vld [vmem:[#allocation5 + $0x538] sm:$0xf]
    %v440 = vld [vmem:[#allocation5 + $0x53c] sm:$0xf]
    %v441 = vld [vmem:[#allocation5 + $0x540] sm:$0xf]
    %v442 = vld [vmem:[#allocation5 + $0x544] sm:$0xf]
    %v443 = vld [vmem:[#allocation5 + $0x548] sm:$0xf]
    %v444 = vld [vmem:[#allocation5 + $0x54c] sm:$0xf]
    %v445 = vld [vmem:[#allocation5 + $0x550] sm:$0xf]
    %v446 = vld [vmem:[#allocation5 + $0x554] sm:$0xf]
    %v447 = vld [vmem:[#allocation5 + $0x558] sm:$0xf]
    %v448 = vld [vmem:[#allocation5 + $0x55c] sm:$0xf]
    %v449 = vld [vmem:[#allocation5 + $0x560] sm:$0xf]
    %v450 = vld [vmem:[#allocation5 + $0x564] sm:$0xf]
    %v451 = vld [vmem:[#allocation5 + $0x568] sm:$0xf]
    %v452 = vld [vmem:[#allocation5 + $0x56c] sm:$0xf]
    %v453 = vld [vmem:[#allocation5 + $0x570] sm:$0xf]
    %v454 = vld [vmem:[#allocation5 + $0x574] sm:$0xf]
    %v455 = vld [vmem:[%s2] sm:$0x1]
    %v457 = vlaneseq
    %v458 = vshrl.u32 %v457, 7
    %v459 = vsub.s32 0, %v458
    %v460 = vrot.slane %v455, %v459
    %v812 = vunpack.c.l.b16 %v105
    %v813 = vunpack.c.l.b16 %v106
    %v814 = vunpack.c.l.b16 %v107
    %v815 = vunpack.c.l.b16 %v108
    %v816 = vunpack.c.l.b16 %v109
    %v817 = vunpack.c.l.b16 %v110
    %v818 = vunpack.c.l.b16 %v111
    %v819 = vunpack.c.l.b16 %v112
    %v820 = vunpack.c.l.b16 %v113
    %v821 = vunpack.c.l.b16 %v114
    %v822 = vunpack.c.l.b16 %v115
    %v823 = vunpack.c.l.b16 %v116
    %v824 = vunpack.c.l.b16 %v117
    %v825 = vunpack.c.l.b16 %v118
    %v826 = vunpack.c.l.b16 %v119
    %v827 = vunpack.c.l.b16 %v120
    %v828 = vunpack.c.l.b16 %v121
    %v829 = vunpack.c.l.b16 %v122
    %v830 = vunpack.c.l.b16 %v123
    %v831 = vunpack.c.l.b16 %v124
    %v832 = vunpack.c.l.b16 %v125
    %v833 = vunpack.c.l.b16 %v126
    %v834 = vunpack.c.l.b16 %v127
    %v835 = vunpack.c.l.b16 %v128
    %v836 = vunpack.c.l.b16 %v129
    %v837 = vunpack.c.l.b16 %v130
    %v838 = vunpack.c.l.b16 %v131
    %v839 = vunpack.c.l.b16 %v132
    %v840 = vunpack.c.l.b16 %v133
    %v841 = vunpack.c.l.b16 %v134
    %v842 = vunpack.c.l.b16 %v135
    %v843 = vunpack.c.l.b16 %v136
    %v844 = vunpack.c.l.b16 %v137
    %v845 = vunpack.c.l.b16 %v138
    %v846 = vunpack.c.l.b16 %v139
    %v847 = vunpack.c.l.b16 %v140
    %v848 = vunpack.c.l.b16 %v141
    %v849 = vunpack.c.l.b16 %v142
    %v850 = vunpack.c.l.b16 %v143
    %v851 = vunpack.c.l.b16 %v144
    %v852 = vunpack.c.l.b16 %v145
    %v853 = vunpack.c.l.b16 %v146
    %v854 = vunpack.c.l.b16 %v147
    %v855 = vunpack.c.l.b16 %v148
    %v856 = vunpack.c.l.b16 %v149
    %v857 = vunpack.c.l.b16 %v150
    %v858 = vunpack.c.l.b16 %v151
    %v859 = vunpack.c.l.b16 %v152
    %v860 = vunpack.c.l.b16 %v153
    %v861 = vunpack.c.l.b16 %v154
    %v862 = vunpack.c.l.b16 %v155
    %v863 = vunpack.c.l.b16 %v156
    %v864 = vunpack.c.l.b16 %v157
    %v865 = vunpack.c.l.b16 %v158
    %v866 = vunpack.c.l.b16 %v159
    %v867 = vunpack.c.l.b16 %v160
    %v868 = vunpack.c.l.b16 %v161
    %v869 = vunpack.c.l.b16 %v162
    %v870 = vunpack.c.l.b16 %v163
    %v871 = vunpack.c.l.b16 %v164
    %v872 = vunpack.c.l.b16 %v165
    %v873 = vunpack.c.l.b16 %v166
    %v874 = vunpack.c.l.b16 %v167
    %v875 = vunpack.c.l.b16 %v168
    %v876 = vunpack.c.l.b16 %v169
    %v877 = vunpack.c.l.b16 %v170
    %v878 = vunpack.c.l.b16 %v171
    %v879 = vunpack.c.l.b16 %v172
    %v880 = vunpack.c.l.b16 %v173
    %v881 = vunpack.c.l.b16 %v174
    %v882 = vunpack.c.l.b16 %v175
    %v883 = vunpack.c.l.b16 %v176
    %v884 = vunpack.c.l.b16 %v177
    %v885 = vunpack.c.l.b16 %v178
    %v886 = vunpack.c.l.b16 %v179
    %v887 = vunpack.c.l.b16 %v180
    %v888 = vunpack.c.l.b16 %v181
    %v889 = vunpack.c.l.b16 %v182
    %v890 = vunpack.c.l.b16 %v183
    %v891 = vunpack.c.l.b16 %v184
    %v892 = vunpack.c.l.b16 %v185
    %v893 = vunpack.c.l.b16 %v186
    %v894 = vunpack.c.l.b16 %v187
    %v895 = vunpack.c.l.b16 %v188
    %v896 = vunpack.c.l.b16 %v189
    %v897 = vunpack.c.l.b16 %v190
    %v898 = vunpack.c.l.b16 %v191
    %v899 = vunpack.c.l.b16 %v192
    %v900 = vunpack.c.l.b16 %v193
    %v901 = vunpack.c.l.b16 %v194
    %v902 = vunpack.c.l.b16 %v195
    %v903 = vunpack.c.l.b16 %v196
    %v904 = vunpack.c.l.b16 %v197
    %v905 = vunpack.c.l.b16 %v198
    %v906 = vunpack.c.l.b16 %v199
    %v907 = vunpack.c.l.b16 %v200
    %v908 = vunpack.c.l.b16 %v201
    %v909 = vunpack.c.l.b16 %v202
    %v910 = vunpack.c.l.b16 %v203
    %v911 = vunpack.c.l.b16 %v204
    %v912 = vunpack.c.l.b16 %v205
    %v913 = vunpack.c.l.b16 %v206
    %v914 = vunpack.c.l.b16 %v207
    %v915 = vunpack.c.l.b16 %v208
    %v916 = vunpack.c.l.b16 %v209
    %v917 = vunpack.c.l.b16 %v210
    %v918 = vunpack.c.l.b16 %v211
    %v919 = vunpack.c.l.b16 %v212
    %v920 = vunpack.c.l.b16 %v213
    %v921 = vunpack.c.l.b16 %v214
    %v922 = vunpack.c.l.b16 %v215
    %v923 = vunpack.c.l.b16 %v216
    %v924 = vunpack.c.l.b16 %v217
    %v925 = vunpack.c.l.b16 %v218
    %v926 = vunpack.c.l.b16 %v219
    %v927 = vunpack.c.l.b16 %v220
    %v928 = vunpack.c.l.b16 %v221
    %v929 = vunpack.c.l.b16 %v222
    %v930 = vunpack.c.l.b16 %v223
    %v931 = vunpack.c.l.b16 %v224
    %v932 = vunpack.c.l.b16 %v225
    %v933 = vunpack.c.l.b16 %v226
    %v934 = vunpack.c.l.b16 %v227
    %v935 = vunpack.c.l.b16 %v228
    %v936 = vunpack.c.l.b16 %v229
    %v937 = vunpack.c.l.b16 %v230
    %v938 = vunpack.c.l.b16 %v231
    %v939 = vunpack.c.l.b16 %v232
    %v940 = vunpack.c.l.b16 %v233
    %v941 = vunpack.c.l.b16 %v234
    %v942 = vunpack.c.l.b16 %v235
    %v943 = vunpack.c.l.b16 %v236
    %v944 = vunpack.c.l.b16 %v237
    %v945 = vunpack.c.l.b16 %v238
    %v946 = vunpack.c.l.b16 %v239
    %v947 = vunpack.c.l.b16 %v240
    %v948 = vunpack.c.l.b16 %v241
    %v949 = vunpack.c.l.b16 %v242
    %v950 = vunpack.c.l.b16 %v243
    %v951 = vunpack.c.l.b16 %v244
    %v952 = vunpack.c.l.b16 %v245
    %v953 = vunpack.c.l.b16 %v246
    %v954 = vunpack.c.l.b16 %v247
    %v955 = vunpack.c.l.b16 %v248
    %v956 = vunpack.c.l.b16 %v249
    %v957 = vunpack.c.l.b16 %v250
    %v958 = vunpack.c.l.b16 %v251
    %v959 = vunpack.c.l.b16 %v252
    %v960 = vunpack.c.l.b16 %v253
    %v961 = vunpack.c.l.b16 %v254
    %v962 = vunpack.c.l.b16 %v255
    %v963 = vunpack.c.l.b16 %v256
    %v964 = vunpack.c.l.b16 %v257
    %v965 = vunpack.c.l.b16 %v258
    %v966 = vunpack.c.l.b16 %v259
    %v967 = vunpack.c.l.b16 %v260
    %v968 = vunpack.c.l.b16 %v261
    %v969 = vunpack.c.l.b16 %v262
    %v970 = vunpack.c.l.b16 %v263
    %v971 = vunpack.c.l.b16 %v264
    %v972 = vunpack.c.l.b16 %v265
    %v973 = vunpack.c.l.b16 %v266
    %v974 = vunpack.c.l.b16 %v267
    %v975 = vunpack.c.l.b16 %v268
    %v976 = vunpack.c.l.b16 %v269
    %v977 = vunpack.c.l.b16 %v270
    %v978 = vunpack.c.l.b16 %v271
    %v979 = vunpack.c.l.b16 %v272
    %v980 = vunpack.c.l.b16 %v273
    %v981 = vunpack.c.l.b16 %v274
    %v982 = vunpack.c.l.b16 %v275
    %v983 = vunpack.c.l.b16 %v276
    %v984 = vunpack.c.l.b16 %v277
    %v985 = vunpack.c.l.b16 %v278
    %v986 = vunpack.c.l.b16 %v279
    %v987 = vunpack.c.l.b16 %v280
    %v988 = vunpack.c.l.b16 %v281
    %v989 = vunpack.c.l.b16 %v282
    %v990 = vunpack.c.l.b16 %v283
    %v991 = vunpack.c.l.b16 %v284
    %v992 = vunpack.c.l.b16 %v285
    %v993 = vunpack.c.l.b16 %v286
    %v994 = vunpack.c.l.b16 %v287
    %v995 = vunpack.c.l.b16 %v288
    %v996 = vunpack.c.l.b16 %v289
    %v997 = vunpack.c.l.b16 %v290
    %v998 = vunpack.c.l.b16 %v291
    %v999 = vunpack.c.l.b16 %v292
    %v1000 = vunpack.c.l.b16 %v293
    %v1001 = vunpack.c.l.b16 %v294
    %v1002 = vunpack.c.l.b16 %v295
    %v1003 = vunpack.c.l.b16 %v296
    %v1004 = vunpack.c.l.b16 %v297
    %v1005 = vunpack.c.l.b16 %v298
    %v1006 = vunpack.c.l.b16 %v299
    %v1007 = vunpack.c.l.b16 %v300
    %v1008 = vunpack.c.l.b16 %v301
    %v1009 = vunpack.c.l.b16 %v302
    %v1010 = vunpack.c.l.b16 %v303
    %v1011 = vunpack.c.l.b16 %v304
    %v1012 = vunpack.c.l.b16 %v305
    %v1013 = vunpack.c.l.b16 %v306
    %v1014 = vunpack.c.l.b16 %v307
    %v1015 = vunpack.c.l.b16 %v308
    %v1016 = vunpack.c.l.b16 %v309
    %v1017 = vunpack.c.l.b16 %v310
    %v1018 = vunpack.c.l.b16 %v311
    %v1019 = vunpack.c.l.b16 %v312
    %v1020 = vunpack.c.l.b16 %v313
    %v1021 = vunpack.c.l.b16 %v314
    %v1022 = vunpack.c.l.b16 %v315
    %v1023 = vunpack.c.l.b16 %v316
    %v1024 = vunpack.c.l.b16 %v317
    %v1025 = vunpack.c.l.b16 %v318
    %v1026 = vunpack.c.l.b16 %v319
    %v1027 = vunpack.c.l.b16 %v320
    %v1028 = vunpack.c.l.b16 %v321
    %v1029 = vunpack.c.l.b16 %v322
    %v1030 = vunpack.c.l.b16 %v323
    %v1031 = vunpack.c.l.b16 %v324
    %v1032 = vunpack.c.l.b16 %v325
    %v1033 = vunpack.c.l.b16 %v326
    %v1034 = vunpack.c.l.b16 %v327
    %v1035 = vunpack.c.l.b16 %v328
    %v1036 = vunpack.c.l.b16 %v329
    %v1037 = vunpack.c.l.b16 %v330
    %v1038 = vunpack.c.l.b16 %v331
    %v1039 = vunpack.c.l.b16 %v332
    %v1040 = vunpack.c.l.b16 %v333
    %v1041 = vunpack.c.l.b16 %v334
    %v1042 = vunpack.c.l.b16 %v335
    %v1043 = vunpack.c.l.b16 %v336
    %v1044 = vunpack.c.l.b16 %v337
    %v1045 = vunpack.c.l.b16 %v338
    %v1046 = vunpack.c.l.b16 %v339
    %v1047 = vunpack.c.l.b16 %v340
    %v1048 = vunpack.c.l.b16 %v341
    %v1049 = vunpack.c.l.b16 %v342
    %v1050 = vunpack.c.l.b16 %v343
    %v1051 = vunpack.c.l.b16 %v344
    %v1052 = vunpack.c.l.b16 %v345
    %v1053 = vunpack.c.l.b16 %v346
    %v1054 = vunpack.c.l.b16 %v347
    %v1055 = vunpack.c.l.b16 %v348
    %v1056 = vunpack.c.l.b16 %v349
    %v1057 = vunpack.c.l.b16 %v350
    %v1058 = vunpack.c.l.b16 %v351
    %v1059 = vunpack.c.l.b16 %v352
    %v1060 = vunpack.c.l.b16 %v353
    %v1061 = vunpack.c.l.b16 %v354
    %v1062 = vunpack.c.l.b16 %v355
    %v1063 = vunpack.c.l.b16 %v356
    %v1064 = vunpack.c.l.b16 %v357
    %v1065 = vunpack.c.l.b16 %v358
    %v1066 = vunpack.c.l.b16 %v359
    %v1067 = vunpack.c.l.b16 %v360
    %v1068 = vunpack.c.l.b16 %v361
    %v1069 = vunpack.c.l.b16 %v362
    %v1070 = vunpack.c.l.b16 %v363
    %v1071 = vunpack.c.l.b16 %v364
    %v1072 = vunpack.c.l.b16 %v365
    %v1073 = vunpack.c.l.b16 %v366
    %v1074 = vunpack.c.l.b16 %v367
    %v1075 = vunpack.c.l.b16 %v368
    %v1076 = vunpack.c.l.b16 %v369
    %v1077 = vunpack.c.l.b16 %v370
    %v1078 = vunpack.c.l.b16 %v371
    %v1079 = vunpack.c.l.b16 %v372
    %v1080 = vunpack.c.l.b16 %v373
    %v1081 = vunpack.c.l.b16 %v374
    %v1082 = vunpack.c.l.b16 %v375
    %v1083 = vunpack.c.l.b16 %v376
    %v1084 = vunpack.c.l.b16 %v377
    %v1085 = vunpack.c.l.b16 %v378
    %v1086 = vunpack.c.l.b16 %v379
    %v1087 = vunpack.c.l.b16 %v380
    %v1088 = vunpack.c.l.b16 %v381
    %v1089 = vunpack.c.l.b16 %v382
    %v1090 = vunpack.c.l.b16 %v383
    %v1091 = vunpack.c.l.b16 %v384
    %v1092 = vunpack.c.l.b16 %v385
    %v1093 = vunpack.c.l.b16 %v386
    %v1094 = vunpack.c.l.b16 %v387
    %v1095 = vunpack.c.l.b16 %v388
    %v1096 = vunpack.c.l.b16 %v389
    %v1097 = vunpack.c.l.b16 %v390
    %v1098 = vunpack.c.l.b16 %v391
    %v1099 = vunpack.c.l.b16 %v392
    %v1100 = vunpack.c.l.b16 %v393
    %v1101 = vunpack.c.l.b16 %v394
    %v1102 = vunpack.c.l.b16 %v395
    %v1103 = vunpack.c.l.b16 %v396
    %v1104 = vunpack.c.l.b16 %v397
    %v1105 = vunpack.c.l.b16 %v398
    %v1106 = vunpack.c.l.b16 %v399
    %v1107 = vunpack.c.l.b16 %v400
    %v1108 = vunpack.c.l.b16 %v401
    %v1109 = vunpack.c.l.b16 %v402
    %v1110 = vunpack.c.l.b16 %v403
    %v1111 = vunpack.c.l.b16 %v404
    %v1112 = vunpack.c.l.b16 %v405
    %v1113 = vunpack.c.l.b16 %v406
    %v1114 = vunpack.c.l.b16 %v407
    %v1115 = vunpack.c.l.b16 %v408
    %v1116 = vunpack.c.l.b16 %v409
    %v1117 = vunpack.c.l.b16 %v410
    %v1118 = vunpack.c.l.b16 %v411
    %v1119 = vunpack.c.l.b16 %v412
    %v1120 = vunpack.c.l.b16 %v413
    %v1121 = vunpack.c.l.b16 %v414
    %v1122 = vunpack.c.l.b16 %v415
    %v1123 = vunpack.c.l.b16 %v416
    %v1124 = vunpack.c.l.b16 %v417
    %v1125 = vunpack.c.l.b16 %v418
    %v1126 = vunpack.c.l.b16 %v419
    %v1127 = vunpack.c.l.b16 %v420
    %v1128 = vunpack.c.l.b16 %v421
    %v1129 = vunpack.c.l.b16 %v422
    %v1130 = vunpack.c.l.b16 %v423
    %v1131 = vunpack.c.l.b16 %v424
    %v1132 = vunpack.c.l.b16 %v425
    %v1133 = vunpack.c.l.b16 %v426
    %v1134 = vunpack.c.l.b16 %v427
    %v1135 = vunpack.c.l.b16 %v428
    %v1136 = vunpack.c.l.b16 %v429
    %v1137 = vunpack.c.l.b16 %v430
    %v1138 = vunpack.c.l.b16 %v431
    %v1139 = vunpack.c.l.b16 %v432
    %v1140 = vunpack.c.l.b16 %v433
    %v1141 = vunpack.c.l.b16 %v434
    %v1142 = vunpack.c.l.b16 %v435
    %v1143 = vunpack.c.l.b16 %v436
    %v1144 = vunpack.c.l.b16 %v437
    %v1145 = vunpack.c.l.b16 %v438
    %v1146 = vunpack.c.l.b16 %v439
    %v1147 = vunpack.c.l.b16 %v440
    %v1148 = vunpack.c.l.b16 %v441
    %v1149 = vunpack.c.l.b16 %v442
    %v1150 = vunpack.c.l.b16 %v443
    %v1151 = vunpack.c.l.b16 %v444
    %v1152 = vunpack.c.l.b16 %v445
    %v1153 = vunpack.c.l.b16 %v446
    %v1154 = vunpack.c.l.b16 %v447
    %v1155 = vunpack.c.l.b16 %v448
    %v1156 = vunpack.c.l.b16 %v449
    %v1157 = vunpack.c.l.b16 %v450
    %v1158 = vunpack.c.l.b16 %v451
    %v1159 = vunpack.c.l.b16 %v452
    %v1160 = vunpack.c.l.b16 %v453
    %v1161 = vunpack.c.l.b16 %v454
    %v1162 = vpack.c.b16 %v813, %v812
    %v1163 = vpack.c.b16 %v815, %v814
    %v1164 = vpack.c.b16 %v817, %v816
    %v1165 = vpack.c.b16 %v819, %v818
    %v1166 = vpack.c.b16 %v821, %v820
    %v1167 = vpack.c.b16 %v823, %v822
    %v1168 = vpack.c.b16 %v825, %v824
    %v1169 = vpack.c.b16 %v827, %v826
    %v1170 = vpack.c.b16 %v829, %v828
    %v1171 = vpack.c.b16 %v831, %v830
    %v1172 = vpack.c.b16 %v833, %v832
    %v1173 = vpack.c.b16 %v835, %v834
    %v1174 = vpack.c.b16 %v837, %v836
    %v1175 = vpack.c.b16 %v839, %v838
    %v1176 = vpack.c.b16 %v841, %v840
    %v1177 = vpack.c.b16 %v843, %v842
    %v1178 = vpack.c.b16 %v845, %v844
    %v1179 = vpack.c.b16 %v847, %v846
    %v1180 = vpack.c.b16 %v849, %v848
    %v1181 = vpack.c.b16 %v851, %v850
    %v1182 = vpack.c.b16 %v853, %v852
    %v1183 = vpack.c.b16 %v855, %v854
    %v1184 = vpack.c.b16 %v857, %v856
    %v1185 = vpack.c.b16 %v859, %v858
    %v1186 = vpack.c.b16 %v861, %v860
    %v1187 = vpack.c.b16 %v863, %v862
    %v1188 = vpack.c.b16 %v865, %v864
    %v1189 = vpack.c.b16 %v867, %v866
    %v1190 = vpack.c.b16 %v869, %v868
    %v1191 = vpack.c.b16 %v871, %v870
    %v1192 = vpack.c.b16 %v873, %v872
    %v1193 = vpack.c.b16 %v875, %v874
    %v1194 = vpack.c.b16 %v877, %v876
    %v1195 = vpack.c.b16 %v879, %v878
    %v1196 = vpack.c.b16 %v881, %v880
    %v1197 = vpack.c.b16 %v883, %v882
    %v1198 = vpack.c.b16 %v885, %v884
    %v1199 = vpack.c.b16 %v887, %v886
    %v1200 = vpack.c.b16 %v889, %v888
    %v1201 = vpack.c.b16 %v891, %v890
    %v1202 = vpack.c.b16 %v893, %v892
    %v1203 = vpack.c.b16 %v895, %v894
    %v1204 = vpack.c.b16 %v897, %v896
    %v1205 = vpack.c.b16 %v899, %v898
    %v1206 = vpack.c.b16 %v901, %v900
    %v1207 = vpack.c.b16 %v903, %v902
    %v1208 = vpack.c.b16 %v905, %v904
    %v1209 = vpack.c.b16 %v907, %v906
    %v1210 = vpack.c.b16 %v909, %v908
    %v1211 = vpack.c.b16 %v911, %v910
    %v1212 = vpack.c.b16 %v913, %v912
    %v1213 = vpack.c.b16 %v915, %v914
    %v1214 = vpack.c.b16 %v917, %v916
    %v1215 = vpack.c.b16 %v919, %v918
    %v1216 = vpack.c.b16 %v921, %v920
    %v1217 = vpack.c.b16 %v923, %v922
    %v1218 = vpack.c.b16 %v925, %v924
    %v1219 = vpack.c.b16 %v927, %v926
    %v1220 = vpack.c.b16 %v929, %v928
    %v1221 = vpack.c.b16 %v931, %v930
    %v1222 = vpack.c.b16 %v933, %v932
    %v1223 = vpack.c.b16 %v935, %v934
    %v1224 = vpack.c.b16 %v937, %v936
    %v1225 = vpack.c.b16 %v939, %v938
    %v1226 = vpack.c.b16 %v941, %v940
    %v1227 = vpack.c.b16 %v943, %v942
    %v1228 = vpack.c.b16 %v945, %v944
    %v1229 = vpack.c.b16 %v947, %v946
    %v1230 = vpack.c.b16 %v949, %v948
    %v1231 = vpack.c.b16 %v951, %v950
    %v1232 = vpack.c.b16 %v953, %v952
    %v1233 = vpack.c.b16 %v955, %v954
    %v1234 = vpack.c.b16 %v957, %v956
    %v1235 = vpack.c.b16 %v959, %v958
    %v1236 = vpack.c.b16 %v961, %v960
    %v1237 = vpack.c.b16 %v963, %v962
    %v1238 = vpack.c.b16 %v965, %v964
    %v1239 = vpack.c.b16 %v967, %v966
    %v1240 = vpack.c.b16 %v969, %v968
    %v1241 = vpack.c.b16 %v971, %v970
    %v1242 = vpack.c.b16 %v973, %v972
    %v1243 = vpack.c.b16 %v975, %v974
    %v1244 = vpack.c.b16 %v977, %v976
    %v1245 = vpack.c.b16 %v979, %v978
    %v1246 = vpack.c.b16 %v981, %v980
    %v1247 = vpack.c.b16 %v983, %v982
    %v1248 = vpack.c.b16 %v985, %v984
    %v1249 = vpack.c.b16 %v987, %v986
    %v1250 = vpack.c.b16 %v989, %v988
    %v1251 = vpack.c.b16 %v991, %v990
    %v1252 = vpack.c.b16 %v993, %v992
    %v1253 = vpack.c.b16 %v995, %v994
    %v1254 = vpack.c.b16 %v997, %v996
    %v1255 = vpack.c.b16 %v999, %v998
    %v1256 = vpack.c.b16 %v1001, %v1000
    %v1257 = vpack.c.b16 %v1003, %v1002
    %v1258 = vpack.c.b16 %v1005, %v1004
    %v1259 = vpack.c.b16 %v1007, %v1006
    %v1260 = vpack.c.b16 %v1009, %v1008
    %v1261 = vpack.c.b16 %v1011, %v1010
    %v1262 = vpack.c.b16 %v1013, %v1012
    %v1263 = vpack.c.b16 %v1015, %v1014
    %v1264 = vpack.c.b16 %v1017, %v1016
    %v1265 = vpack.c.b16 %v1019, %v1018
    %v1266 = vpack.c.b16 %v1021, %v1020
    %v1267 = vpack.c.b16 %v1023, %v1022
    %v1268 = vpack.c.b16 %v1025, %v1024
    %v1269 = vpack.c.b16 %v1027, %v1026
    %v1270 = vpack.c.b16 %v1029, %v1028
    %v1271 = vpack.c.b16 %v1031, %v1030
    %v1272 = vpack.c.b16 %v1033, %v1032
    %v1273 = vpack.c.b16 %v1035, %v1034
    %v1274 = vpack.c.b16 %v1037, %v1036
    %v1275 = vpack.c.b16 %v1039, %v1038
    %v1276 = vpack.c.b16 %v1041, %v1040
    %v1277 = vpack.c.b16 %v1043, %v1042
    %v1278 = vpack.c.b16 %v1045, %v1044
    %v1279 = vpack.c.b16 %v1047, %v1046
    %v1280 = vpack.c.b16 %v1049, %v1048
    %v1281 = vpack.c.b16 %v1051, %v1050
    %v1282 = vpack.c.b16 %v1053, %v1052
    %v1283 = vpack.c.b16 %v1055, %v1054
    %v1284 = vpack.c.b16 %v1057, %v1056
    %v1285 = vpack.c.b16 %v1059, %v1058
    %v1286 = vpack.c.b16 %v1061, %v1060
    %v1287 = vpack.c.b16 %v1063, %v1062
    %v1288 = vpack.c.b16 %v1065, %v1064
    %v1289 = vpack.c.b16 %v1067, %v1066
    %v1290 = vpack.c.b16 %v1069, %v1068
    %v1291 = vpack.c.b16 %v1071, %v1070
    %v1292 = vpack.c.b16 %v1073, %v1072
    %v1293 = vpack.c.b16 %v1075, %v1074
    %v1294 = vpack.c.b16 %v1077, %v1076
    %v1295 = vpack.c.b16 %v1079, %v1078
    %v1296 = vpack.c.b16 %v1081, %v1080
    %v1297 = vpack.c.b16 %v1083, %v1082
    %v1298 = vpack.c.b16 %v1085, %v1084
    %v1299 = vpack.c.b16 %v1087, %v1086
    %v1300 = vpack.c.b16 %v1089, %v1088
    %v1301 = vpack.c.b16 %v1091, %v1090
    %v1302 = vpack.c.b16 %v1093, %v1092
    %v1303 = vpack.c.b16 %v1095, %v1094
    %v1304 = vpack.c.b16 %v1097, %v1096
    %v1305 = vpack.c.b16 %v1099, %v1098
    %v1306 = vpack.c.b16 %v1101, %v1100
    %v1307 = vpack.c.b16 %v1103, %v1102
    %v1308 = vpack.c.b16 %v1105, %v1104
    %v1309 = vpack.c.b16 %v1107, %v1106
    %v1310 = vpack.c.b16 %v1109, %v1108
    %v1311 = vpack.c.b16 %v1111, %v1110
    %v1312 = vpack.c.b16 %v1113, %v1112
    %v1313 = vpack.c.b16 %v1115, %v1114
    %v1314 = vpack.c.b16 %v1117, %v1116
    %v1315 = vpack.c.b16 %v1119, %v1118
    %v1316 = vpack.c.b16 %v1121, %v1120
    %v1317 = vpack.c.b16 %v1123, %v1122
    %v1318 = vpack.c.b16 %v1125, %v1124
    %v1319 = vpack.c.b16 %v1127, %v1126
    %v1320 = vpack.c.b16 %v1129, %v1128
    %v1321 = vpack.c.b16 %v1131, %v1130
    %v1322 = vpack.c.b16 %v1133, %v1132
    %v1323 = vpack.c.b16 %v1135, %v1134
    %v1324 = vpack.c.b16 %v1137, %v1136
    %v1325 = vpack.c.b16 %v1139, %v1138
    %v1326 = vpack.c.b16 %v1141, %v1140
    %v1327 = vpack.c.b16 %v1143, %v1142
    %v1328 = vpack.c.b16 %v1145, %v1144
    %v1329 = vpack.c.b16 %v1147, %v1146
    %v1330 = vpack.c.b16 %v1149, %v1148
    %v1331 = vpack.c.b16 %v1151, %v1150
    %v1332 = vpack.c.b16 %v1153, %v1152
    %v1333 = vpack.c.b16 %v1155, %v1154
    %v1334 = vpack.c.b16 %v1157, %v1156
    %v1335 = vpack.c.b16 %v1159, %v1158
    %v1336 = vpack.c.b16 %v1161, %v1160
    %vm1512 = vcmask 916480
    %v1514 = vsel %vm1512, %v104, 0
    %1516 = vmatprep.subr.bf16.mxu0 0
    %1517 = vmatpush1.bf16.msra.mxu0 %v1162
    %1518 = vmatprep.subr.bf16.mxu0 0
    %1519 = vmatpush1.bf16.msra.mxu0 %v1163
    %1520 = vmatprep.subr.bf16.mxu0 0
    %1521 = vmatpush1.bf16.msra.mxu0 %v1164
    %1522 = vmatprep.subr.bf16.mxu0 0
    %1523 = vmatpush1.bf16.msra.mxu0 %v1165
    %1524 = vmatprep.subr.bf16.mxu0 0
    %1525 = vmatpush1.bf16.msra.mxu0 %v1166
    %1526 = vmatprep.subr.bf16.mxu0 0
    %1527 = vmatpush1.bf16.msra.mxu0 %v1167
    %1528 = vmatprep.subr.bf16.mxu0 0
    %1529 = vmatpush1.bf16.msra.mxu0 %v1168
    %1530 = vmatprep.subr.bf16.mxu0 0
    %1531 = vmatpush1.bf16.msra.mxu0 %v1169
    %1532 = vmatprep.subr.bf16.mxu0 0
    %1533 = vmatpush1.bf16.msra.mxu0 %v1170
    %1534 = vmatprep.subr.bf16.mxu0 0
    %1535 = vmatpush1.bf16.msra.mxu0 %v1171
    %1536 = vmatprep.subr.bf16.mxu0 0
    %1537 = vmatpush1.bf16.msra.mxu0 %v1172
    %1538 = vmatprep.subr.bf16.mxu0 0
    %1539 = vmatpush1.bf16.msra.mxu0 %v1173
    %1540 = vmatprep.subr.bf16.mxu0 0
    %1541 = vmatpush1.bf16.msra.mxu0 %v1174
    %1542 = vmatprep.subr.bf16.mxu0 0
    %1543 = vmatpush1.bf16.msra.mxu0 %v1175
    %1544 = vmatprep.subr.bf16.mxu0 0
    %1545 = vmatpush1.bf16.msra.mxu0 %v1176
    %1546 = vmatprep.subr.bf16.mxu0 0
    %1547 = vmatpush1.bf16.msra.mxu0 %v1177
    %1548 = vmatprep.mubr.bf16.mxu0 %v84
    %1549 = vmatmul.mubr.bf16.gmra.mrb[0].mxu0 %v83
    %v1550 = vpop.f32.mrb[0].mxu0
    %v1551 = vadd.f32 %v460, %v1550
    %v1552 = vpop.f32.mrb[0].mxu0
    %v1553 = vpop.f32.mrb[0].mxu0
    %v1554 = vpop.f32.mrb[0].mxu0
    %1555 = vdwg.mxu0
    %1556 = vmatprep.subr.bf16.mxu0 0
    %1557 = vmatpush1.bf16.msra.mxu0 %v1178
    %1558 = vmatprep.subr.bf16.mxu0 0
    %1559 = vmatpush1.bf16.msra.mxu0 %v1179
    %1560 = vmatprep.subr.bf16.mxu0 0
    %1561 = vmatpush1.bf16.msra.mxu0 %v1180
    %1562 = vmatprep.subr.bf16.mxu0 0
    %1563 = vmatpush1.bf16.msra.mxu0 %v1181
    %1564 = vmatprep.subr.bf16.mxu0 0
    %1565 = vmatpush1.bf16.msra.mxu0 %v1182
    %1566 = vmatprep.subr.bf16.mxu0 0
    %1567 = vmatpush1.bf16.msra.mxu0 %v1183
    %1568 = vmatprep.subr.bf16.mxu0 0
    %1569 = vmatpush1.bf16.msra.mxu0 %v1184
    %1570 = vmatprep.subr.bf16.mxu0 0
    %1571 = vmatpush1.bf16.msra.mxu0 %v1185
    %1572 = vmatprep.subr.bf16.mxu0 0
    %1573 = vmatpush1.bf16.msra.mxu0 %v1186
    %1574 = vmatprep.subr.bf16.mxu0 0
    %1575 = vmatpush1.bf16.msra.mxu0 %v1187
    %1576 = vmatprep.subr.bf16.mxu0 0
    %1577 = vmatpush1.bf16.msra.mxu0 %v1188
    %1578 = vmatprep.subr.bf16.mxu0 0
    %1579 = vmatpush1.bf16.msra.mxu0 %v1189
    %1580 = vmatprep.subr.bf16.mxu0 0
    %1581 = vmatpush1.bf16.msra.mxu0 %v1190
    %1582 = vmatprep.subr.bf16.mxu0 0
    %1583 = vmatpush1.bf16.msra.mxu0 %v1191
    %1584 = vmatprep.subr.bf16.mxu0 0
    %1585 = vmatpush1.bf16.msra.mxu0 %v1192
    %1586 = vmatprep.subr.bf16.mxu0 0
    %1587 = vmatpush1.bf16.msra.mxu0 %v1193
    %1588 = vmatprep.mubr.bf16.mxu0 %v86
    %1589 = vmatmul.mubr.bf16.gmra.mrb[0].mxu0 %v85
    %v1590 = vpop.f32.mrb[0].mxu0
    %v1591 = vadd.f32 %v1551, %v1590
    %v1592 = vpop.f32.mrb[0].mxu0
    %v1593 = vpop.f32.mrb[0].mxu0
    %v1594 = vpop.f32.mrb[0].mxu0
    %1595 = vdwg.mxu0
    %1596 = vmatprep.subr.bf16.mxu0 0
    %1597 = vmatpush1.bf16.msra.mxu0 %v1194
    %1598 = vmatprep.subr.bf16.mxu0 0
    %1599 = vmatpush1.bf16.msra.mxu0 %v1195
    %1600 = vmatprep.subr.bf16.mxu0 0
    %1601 = vmatpush1.bf16.msra.mxu0 %v1196
    %1602 = vmatprep.subr.bf16.mxu0 0
    %1603 = vmatpush1.bf16.msra.mxu0 %v1197
    %1604 = vmatprep.subr.bf16.mxu0 0
    %1605 = vmatpush1.bf16.msra.mxu0 %v1198
    %1606 = vmatprep.subr.bf16.mxu0 0
    %1607 = vmatpush1.bf16.msra.mxu0 %v1199
    %1608 = vmatprep.subr.bf16.mxu0 0
    %1609 = vmatpush1.bf16.msra.mxu0 %v1200
    %1610 = vmatprep.subr.bf16.mxu0 0
    %1611 = vmatpush1.bf16.msra.mxu0 %v1201
    %1612 = vmatprep.subr.bf16.mxu0 0
    %1613 = vmatpush1.bf16.msra.mxu0 %v1202
    %1614 = vmatprep.subr.bf16.mxu0 0
    %1615 = vmatpush1.bf16.msra.mxu0 %v1203
    %1616 = vmatprep.subr.bf16.mxu0 0
    %1617 = vmatpush1.bf16.msra.mxu0 %v1204
    %1618 = vmatprep.subr.bf16.mxu0 0
    %1619 = vmatpush1.bf16.msra.mxu0 %v1205
    %1620 = vmatprep.subr.bf16.mxu0 0
    %1621 = vmatpush1.bf16.msra.mxu0 %v1206
    %1622 = vmatprep.subr.bf16.mxu0 0
    %1623 = vmatpush1.bf16.msra.mxu0 %v1207
    %1624 = vmatprep.subr.bf16.mxu0 0
    %1625 = vmatpush1.bf16.msra.mxu0 %v1208
    %1626 = vmatprep.subr.bf16.mxu0 0
    %1627 = vmatpush1.bf16.msra.mxu0 %v1209
    %1628 = vmatprep.mubr.bf16.mxu0 %v88
    %1629 = vmatmul.mubr.bf16.gmra.mrb[0].mxu0 %v87
    %v1630 = vpop.f32.mrb[0].mxu0
    %v1631 = vadd.f32 %v1591, %v1630
    %v1632 = vpop.f32.mrb[0].mxu0
    %v1633 = vpop.f32.mrb[0].mxu0
    %v1634 = vpop.f32.mrb[0].mxu0
    %1635 = vdwg.mxu0
    %1636 = vmatprep.subr.bf16.mxu0 0
    %1637 = vmatpush1.bf16.msra.mxu0 %v1210
    %1638 = vmatprep.subr.bf16.mxu0 0
    %1639 = vmatpush1.bf16.msra.mxu0 %v1211
    %1640 = vmatprep.subr.bf16.mxu0 0
    %1641 = vmatpush1.bf16.msra.mxu0 %v1212
    %1642 = vmatprep.subr.bf16.mxu0 0
    %1643 = vmatpush1.bf16.msra.mxu0 %v1213
    %1644 = vmatprep.subr.bf16.mxu0 0
    %1645 = vmatpush1.bf16.msra.mxu0 %v1214
    %1646 = vmatprep.subr.bf16.mxu0 0
    %1647 = vmatpush1.bf16.msra.mxu0 %v1215
    %1648 = vmatprep.subr.bf16.mxu0 0
    %1649 = vmatpush1.bf16.msra.mxu0 %v1216
    %1650 = vmatprep.subr.bf16.mxu0 0
    %1651 = vmatpush1.bf16.msra.mxu0 %v1217
    %1652 = vmatprep.subr.bf16.mxu0 0
    %1653 = vmatpush1.bf16.msra.mxu0 %v1218
    %1654 = vmatprep.subr.bf16.mxu0 0
    %1655 = vmatpush1.bf16.msra.mxu0 %v1219
    %1656 = vmatprep.subr.bf16.mxu0 0
    %1657 = vmatpush1.bf16.msra.mxu0 %v1220
    %1658 = vmatprep.subr.bf16.mxu0 0
    %1659 = vmatpush1.bf16.msra.mxu0 %v1221
    %1660 = vmatprep.subr.bf16.mxu0 0
    %1661 = vmatpush1.bf16.msra.mxu0 %v1222
    %1662 = vmatprep.subr.bf16.mxu0 0
    %1663 = vmatpush1.bf16.msra.mxu0 %v1223
    %1664 = vmatprep.subr.bf16.mxu0 0
    %1665 = vmatpush1.bf16.msra.mxu0 %v1224
    %1666 = vmatprep.subr.bf16.mxu0 0
    %1667 = vmatpush1.bf16.msra.mxu0 %v1225
    %1668 = vmatprep.mubr.bf16.mxu0 %v90
    %1669 = vmatmul.mubr.bf16.gmra.mrb[0].mxu0 %v89
    %v1670 = vpop.f32.mrb[0].mxu0
    %v1671 = vadd.f32 %v1631, %v1670
    %v1672 = vpop.f32.mrb[0].mxu0
    %v1673 = vpop.f32.mrb[0].mxu0
    %v1674 = vpop.f32.mrb[0].mxu0
    %1675 = vdwg.mxu0
    %1676 = vmatprep.subr.bf16.mxu0 0
    %1677 = vmatpush1.bf16.msra.mxu0 %v1226
    %1678 = vmatprep.subr.bf16.mxu0 0
    %1679 = vmatpush1.bf16.msra.mxu0 %v1227
    %1680 = vmatprep.subr.bf16.mxu0 0
    %1681 = vmatpush1.bf16.msra.mxu0 %v1228
    %1682 = vmatprep.subr.bf16.mxu0 0
    %1683 = vmatpush1.bf16.msra.mxu0 %v1229
    %1684 = vmatprep.subr.bf16.mxu0 0
    %1685 = vmatpush1.bf16.msra.mxu0 %v1230
    %1686 = vmatprep.subr.bf16.mxu0 0
    %1687 = vmatpush1.bf16.msra.mxu0 %v1231
    %1688 = vmatprep.subr.bf16.mxu0 0
    %1689 = vmatpush1.bf16.msra.mxu0 %v1232
    %1690 = vmatprep.subr.bf16.mxu0 0
    %1691 = vmatpush1.bf16.msra.mxu0 %v1233
    %1692 = vmatprep.subr.bf16.mxu0 0
    %1693 = vmatpush1.bf16.msra.mxu0 %v1234
    %1694 = vmatprep.subr.bf16.mxu0 0
    %1695 = vmatpush1.bf16.msra.mxu0 %v1235
    %1696 = vmatprep.subr.bf16.mxu0 0
    %1697 = vmatpush1.bf16.msra.mxu0 %v1236
    %1698 = vmatprep.subr.bf16.mxu0 0
    %1699 = vmatpush1.bf16.msra.mxu0 %v1237
    %1700 = vmatprep.subr.bf16.mxu0 0
    %1701 = vmatpush1.bf16.msra.mxu0 %v1238
    %1702 = vmatprep.subr.bf16.mxu0 0
    %1703 = vmatpush1.bf16.msra.mxu0 %v1239
    %1704 = vmatprep.subr.bf16.mxu0 0
    %1705 = vmatpush1.bf16.msra.mxu0 %v1240
    %1706 = vmatprep.subr.bf16.mxu0 0
    %1707 = vmatpush1.bf16.msra.mxu0 %v1241
    %1708 = vmatprep.mubr.bf16.mxu0 %v92
    %1709 = vmatmul.mubr.bf16.gmra.mrb[0].mxu0 %v91
    %v1710 = vpop.f32.mrb[0].mxu0
    %v1711 = vadd.f32 %v1671, %v1710
    %v1712 = vpop.f32.mrb[0].mxu0
    %v1713 = vpop.f32.mrb[0].mxu0
    %v1714 = vpop.f32.mrb[0].mxu0
    %1715 = vdwg.mxu0
    %1716 = vmatprep.subr.bf16.mxu0 0
    %1717 = vmatpush1.bf16.msra.mxu0 %v1242
    %1718 = vmatprep.subr.bf16.mxu0 0
    %1719 = vmatpush1.bf16.msra.mxu0 %v1243
    %1720 = vmatprep.subr.bf16.mxu0 0
    %1721 = vmatpush1.bf16.msra.mxu0 %v1244
    %1722 = vmatprep.subr.bf16.mxu0 0
    %1723 = vmatpush1.bf16.msra.mxu0 %v1245
    %1724 = vmatprep.subr.bf16.mxu0 0
    %1725 = vmatpush1.bf16.msra.mxu0 %v1246
    %1726 = vmatprep.subr.bf16.mxu0 0
    %1727 = vmatpush1.bf16.msra.mxu0 %v1247
    %1728 = vmatprep.subr.bf16.mxu0 0
    %1729 = vmatpush1.bf16.msra.mxu0 %v1248
    %1730 = vmatprep.subr.bf16.mxu0 0
    %1731 = vmatpush1.bf16.msra.mxu0 %v1249
    %1732 = vmatprep.subr.bf16.mxu0 0
    %1733 = vmatpush1.bf16.msra.mxu0 %v1250
    %1734 = vmatprep.subr.bf16.mxu0 0
    %1735 = vmatpush1.bf16.msra.mxu0 %v1251
    %1736 = vmatprep.subr.bf16.mxu0 0
    %1737 = vmatpush1.bf16.msra.mxu0 %v1252
    %1738 = vmatprep.subr.bf16.mxu0 0
    %1739 = vmatpush1.bf16.msra.mxu0 %v1253
    %1740 = vmatprep.subr.bf16.mxu0 0
    %1741 = vmatpush1.bf16.msra.mxu0 %v1254
    %1742 = vmatprep.subr.bf16.mxu0 0
    %1743 = vmatpush1.bf16.msra.mxu0 %v1255
    %1744 = vmatprep.subr.bf16.mxu0 0
    %1745 = vmatpush1.bf16.msra.mxu0 %v1256
    %1746 = vmatprep.subr.bf16.mxu0 0
    %1747 = vmatpush1.bf16.msra.mxu0 %v1257
    %1748 = vmatprep.mubr.bf16.mxu0 %v94
    %1749 = vmatmul.mubr.bf16.gmra.mrb[0].mxu0 %v93
    %v1750 = vpop.f32.mrb[0].mxu0
    %v1751 = vadd.f32 %v1711, %v1750
    %v1752 = vpop.f32.mrb[0].mxu0
    %v1753 = vpop.f32.mrb[0].mxu0
    %v1754 = vpop.f32.mrb[0].mxu0
    %1755 = vdwg.mxu0
    %1756 = vmatprep.subr.bf16.mxu0 0
    %1757 = vmatpush1.bf16.msra.mxu0 %v1258
    %1758 = vmatprep.subr.bf16.mxu0 0
    %1759 = vmatpush1.bf16.msra.mxu0 %v1259
    %1760 = vmatprep.subr.bf16.mxu0 0
    %1761 = vmatpush1.bf16.msra.mxu0 %v1260
    %1762 = vmatprep.subr.bf16.mxu0 0
    %1763 = vmatpush1.bf16.msra.mxu0 %v1261
    %1764 = vmatprep.subr.bf16.mxu0 0
    %1765 = vmatpush1.bf16.msra.mxu0 %v1262
    %1766 = vmatprep.subr.bf16.mxu0 0
    %1767 = vmatpush1.bf16.msra.mxu0 %v1263
    %1768 = vmatprep.subr.bf16.mxu0 0
    %1769 = vmatpush1.bf16.msra.mxu0 %v1264
    %1770 = vmatprep.subr.bf16.mxu0 0
    %1771 = vmatpush1.bf16.msra.mxu0 %v1265
    %1772 = vmatprep.subr.bf16.mxu0 0
    %1773 = vmatpush1.bf16.msra.mxu0 %v1266
    %1774 = vmatprep.subr.bf16.mxu0 0
    %1775 = vmatpush1.bf16.msra.mxu0 %v1267
    %1776 = vmatprep.subr.bf16.mxu0 0
    %1777 = vmatpush1.bf16.msra.mxu0 %v1268
    %1778 = vmatprep.subr.bf16.mxu0 0
    %1779 = vmatpush1.bf16.msra.mxu0 %v1269
    %1780 = vmatprep.subr.bf16.mxu0 0
    %1781 = vmatpush1.bf16.msra.mxu0 %v1270
    %1782 = vmatprep.subr.bf16.mxu0 0
    %1783 = vmatpush1.bf16.msra.mxu0 %v1271
    %1784 = vmatprep.subr.bf16.mxu0 0
    %1785 = vmatpush1.bf16.msra.mxu0 %v1272
    %1786 = vmatprep.subr.bf16.mxu0 0
    %1787 = vmatpush1.bf16.msra.mxu0 %v1273
    %1788 = vmatprep.mubr.bf16.mxu0 %v96
    %1789 = vmatmul.mubr.bf16.gmra.mrb[0].mxu0 %v95
    %v1790 = vpop.f32.mrb[0].mxu0
    %v1791 = vadd.f32 %v1751, %v1790
    %v1792 = vpop.f32.mrb[0].mxu0
    %v1793 = vpop.f32.mrb[0].mxu0
    %v1794 = vpop.f32.mrb[0].mxu0
    %1795 = vdwg.mxu0
    %1796 = vmatprep.subr.bf16.mxu0 0
    %1797 = vmatpush1.bf16.msra.mxu0 %v1274
    %1798 = vmatprep.subr.bf16.mxu0 0
    %1799 = vmatpush1.bf16.msra.mxu0 %v1275
    %1800 = vmatprep.subr.bf16.mxu0 0
    %1801 = vmatpush1.bf16.msra.mxu0 %v1276
    %1802 = vmatprep.subr.bf16.mxu0 0
    %1803 = vmatpush1.bf16.msra.mxu0 %v1277
    %1804 = vmatprep.subr.bf16.mxu0 0
    %1805 = vmatpush1.bf16.msra.mxu0 %v1278
    %1806 = vmatprep.subr.bf16.mxu0 0
    %1807 = vmatpush1.bf16.msra.mxu0 %v1279
    %1808 = vmatprep.subr.bf16.mxu0 0
    %1809 = vmatpush1.bf16.msra.mxu0 %v1280
    %1810 = vmatprep.subr.bf16.mxu0 0
    %1811 = vmatpush1.bf16.msra.mxu0 %v1281
    %1812 = vmatprep.subr.bf16.mxu0 0
    %1813 = vmatpush1.bf16.msra.mxu0 %v1282
    %1814 = vmatprep.subr.bf16.mxu0 0
    %1815 = vmatpush1.bf16.msra.mxu0 %v1283
    %1816 = vmatprep.subr.bf16.mxu0 0
    %1817 = vmatpush1.bf16.msra.mxu0 %v1284
    %1818 = vmatprep.subr.bf16.mxu0 0
    %1819 = vmatpush1.bf16.msra.mxu0 %v1285
    %1820 = vmatprep.subr.bf16.mxu0 0
    %1821 = vmatpush1.bf16.msra.mxu0 %v1286
    %1822 = vmatprep.subr.bf16.mxu0 0
    %1823 = vmatpush1.bf16.msra.mxu0 %v1287
    %1824 = vmatprep.subr.bf16.mxu0 0
    %1825 = vmatpush1.bf16.msra.mxu0 %v1288
    %1826 = vmatprep.subr.bf16.mxu0 0
    %1827 = vmatpush1.bf16.msra.mxu0 %v1289
    %1828 = vmatprep.mubr.bf16.mxu0 %v98
    %1829 = vmatmul.mubr.bf16.gmra.mrb[0].mxu0 %v97
    %v1830 = vpop.f32.mrb[0].mxu0
    %v1831 = vadd.f32 %v1791, %v1830
    %v1832 = vpop.f32.mrb[0].mxu0
    %v1833 = vpop.f32.mrb[0].mxu0
    %v1834 = vpop.f32.mrb[0].mxu0
    %1835 = vdwg.mxu0
    %1836 = vmatprep.subr.bf16.mxu0 0
    %1837 = vmatpush1.bf16.msra.mxu0 %v1290
    %1838 = vmatprep.subr.bf16.mxu0 0
    %1839 = vmatpush1.bf16.msra.mxu0 %v1291
    %1840 = vmatprep.subr.bf16.mxu0 0
    %1841 = vmatpush1.bf16.msra.mxu0 %v1292
    %1842 = vmatprep.subr.bf16.mxu0 0
    %1843 = vmatpush1.bf16.msra.mxu0 %v1293
    %1844 = vmatprep.subr.bf16.mxu0 0
    %1845 = vmatpush1.bf16.msra.mxu0 %v1294
    %1846 = vmatprep.subr.bf16.mxu0 0
    %1847 = vmatpush1.bf16.msra.mxu0 %v1295
    %1848 = vmatprep.subr.bf16.mxu0 0
    %1849 = vmatpush1.bf16.msra.mxu0 %v1296
    %1850 = vmatprep.subr.bf16.mxu0 0
    %1851 = vmatpush1.bf16.msra.mxu0 %v1297
    %1852 = vmatprep.subr.bf16.mxu0 0
    %1853 = vmatpush1.bf16.msra.mxu0 %v1298
    %1854 = vmatprep.subr.bf16.mxu0 0
    %1855 = vmatpush1.bf16.msra.mxu0 %v1299
    %1856 = vmatprep.subr.bf16.mxu0 0
    %1857 = vmatpush1.bf16.msra.mxu0 %v1300
    %1858 = vmatprep.subr.bf16.mxu0 0
    %1859 = vmatpush1.bf16.msra.mxu0 %v1301
    %1860 = vmatprep.subr.bf16.mxu0 0
    %1861 = vmatpush1.bf16.msra.mxu0 %v1302
    %1862 = vmatprep.subr.bf16.mxu0 0
    %1863 = vmatpush1.bf16.msra.mxu0 %v1303
    %1864 = vmatprep.subr.bf16.mxu0 0
    %1865 = vmatpush1.bf16.msra.mxu0 %v1304
    %1866 = vmatprep.subr.bf16.mxu0 0
    %1867 = vmatpush1.bf16.msra.mxu0 %v1305
    %1868 = vmatprep.mubr.bf16.mxu0 %v100
    %1869 = vmatmul.mubr.bf16.gmra.mrb[0].mxu0 %v99
    %v1870 = vpop.f32.mrb[0].mxu0
    %v1871 = vadd.f32 %v1831, %v1870
    %v1872 = vpop.f32.mrb[0].mxu0
    %v1873 = vpop.f32.mrb[0].mxu0
    %v1874 = vpop.f32.mrb[0].mxu0
    %1875 = vdwg.mxu0
    %1876 = vmatprep.subr.bf16.mxu0 0
    %1877 = vmatpush1.bf16.msra.mxu0 %v1306
    %1878 = vmatprep.subr.bf16.mxu0 0
    %1879 = vmatpush1.bf16.msra.mxu0 %v1307
    %1880 = vmatprep.subr.bf16.mxu0 0
    %1881 = vmatpush1.bf16.msra.mxu0 %v1308
    %1882 = vmatprep.subr.bf16.mxu0 0
    %1883 = vmatpush1.bf16.msra.mxu0 %v1309
    %1884 = vmatprep.subr.bf16.mxu0 0
    %1885 = vmatpush1.bf16.msra.mxu0 %v1310
    %1886 = vmatprep.subr.bf16.mxu0 0
    %1887 = vmatpush1.bf16.msra.mxu0 %v1311
    %1888 = vmatprep.subr.bf16.mxu0 0
    %1889 = vmatpush1.bf16.msra.mxu0 %v1312
    %1890 = vmatprep.subr.bf16.mxu0 0
    %1891 = vmatpush1.bf16.msra.mxu0 %v1313
    %1892 = vmatprep.subr.bf16.mxu0 0
    %1893 = vmatpush1.bf16.msra.mxu0 %v1314
    %1894 = vmatprep.subr.bf16.mxu0 0
    %1895 = vmatpush1.bf16.msra.mxu0 %v1315
    %1896 = vmatprep.subr.bf16.mxu0 0
    %1897 = vmatpush1.bf16.msra.mxu0 %v1316
    %1898 = vmatprep.subr.bf16.mxu0 0
    %1899 = vmatpush1.bf16.msra.mxu0 %v1317
    %1900 = vmatprep.subr.bf16.mxu0 0
    %1901 = vmatpush1.bf16.msra.mxu0 %v1318
    %1902 = vmatprep.subr.bf16.mxu0 0
    %1903 = vmatpush1.bf16.msra.mxu0 %v1319
    %1904 = vmatprep.subr.bf16.mxu0 0
    %1905 = vmatpush1.bf16.msra.mxu0 %v1320
    %1906 = vmatprep.subr.bf16.mxu0 0
    %1907 = vmatpush1.bf16.msra.mxu0 %v1321
    %1908 = vmatprep.mubr.bf16.mxu0 %v102
    %1909 = vmatmul.mubr.bf16.gmra.mrb[0].mxu0 %v101
    %v1910 = vpop.f32.mrb[0].mxu0
    %v1911 = vadd.f32 %v1871, %v1910
    %v1912 = vpop.f32.mrb[0].mxu0
    %v1913 = vpop.f32.mrb[0].mxu0
    %v1914 = vpop.f32.mrb[0].mxu0
    %1915 = vdwg.mxu0
    %1916 = vmatprep.subr.bf16.mxu0 0
    %1917 = vmatpush1.bf16.msra.mxu0 %v1322
    %1918 = vmatprep.subr.bf16.mxu0 0
    %1919 = vmatpush1.bf16.msra.mxu0 %v1323
    %1920 = vmatprep.subr.bf16.mxu0 0
    %1921 = vmatpush1.bf16.msra.mxu0 %v1324
    %1922 = vmatprep.subr.bf16.mxu0 0
    %1923 = vmatpush1.bf16.msra.mxu0 %v1325
    %1924 = vmatprep.subr.bf16.mxu0 0
    %1925 = vmatpush1.bf16.msra.mxu0 %v1326
    %1926 = vmatprep.subr.bf16.mxu0 0
    %1927 = vmatpush1.bf16.msra.mxu0 %v1327
    %1928 = vmatprep.subr.bf16.mxu0 0
    %1929 = vmatpush1.bf16.msra.mxu0 %v1328
    %1930 = vmatprep.subr.bf16.mxu0 0
    %1931 = vmatpush1.bf16.msra.mxu0 %v1329
    %1932 = vmatprep.subr.bf16.mxu0 0
    %1933 = vmatpush1.bf16.msra.mxu0 %v1330
    %1934 = vmatprep.subr.bf16.mxu0 0
    %1935 = vmatpush1.bf16.msra.mxu0 %v1331
    %1936 = vmatprep.subr.bf16.mxu0 0
    %1937 = vmatpush1.bf16.msra.mxu0 %v1332
    %1938 = vmatprep.subr.bf16.mxu0 0
    %1939 = vmatpush1.bf16.msra.mxu0 %v1333
    %1940 = vmatprep.subr.bf16.mxu0 0
    %1941 = vmatpush1.bf16.msra.mxu0 %v1334
    %1942 = vmatprep.subr.bf16.mxu0 0
    %1943 = vmatpush1.bf16.msra.mxu0 %v1335
    %1944 = vmatprep.subr.bf16.mxu0 0
    %1945 = vmatpush1.bf16.msra.mxu0 %v1336
    %1946 = vmatprep.subr.bf16.mxu0 0
    %1947 = vmatpush1.bf16.msra.mxu0 0
    %1948 = vmatprep.mubr.bf16.mxu0 %v1514
    %1949 = vmatmul.mubr.bf16.gmra.mrb[0].mxu0 %v103
    %v1950 = vpop.f32.mrb[0].mxu0
    %v1951 = vadd.f32 %v1911, %v1950
    %v1952 = vpop.f32.mrb[0].mxu0
    %v1953 = vpop.f32.mrb[0].mxu0
    %v1954 = vpop.f32.mrb[0].mxu0
    %1955 = vdwg.mxu0
    %v1956 = vmax.f32 %v1951, 0.0
    %v1957 = vpack.c.bf16 %v1956, %v1956
    %v1958 = vld [vmem:[#allocation7] sm:$0xf]
    %v1959 = vld [vmem:[#allocation7 + $0x4] sm:$0xf]
    %v1960 = vld [vmem:[#allocation7 + $0x8] sm:$0xf]
    %v1961 = vld [vmem:[#allocation7 + $0xc] sm:$0xf]
    %v1962 = vld [vmem:[#allocation7 + $0x10] sm:$0xf]
    %v1963 = vld [vmem:[#allocation7 + $0x14] sm:$0xf]
    %v1964 = vld [vmem:[#allocation7 + $0x18] sm:$0xf]
    %v1965 = vld [vmem:[#allocation7 + $0x1c] sm:$0xf]
    %v1966 = vld [vmem:[#allocation7 + $0x20] sm:$0xf]
    %v1967 = vld [vmem:[#allocation7 + $0x24] sm:$0xf]
    %v1968 = vld [vmem:[#allocation7 + $0x28] sm:$0xf]
    %v1969 = vld [vmem:[#allocation7 + $0x2c] sm:$0xf]
    %v1970 = vld [vmem:[#allocation7 + $0x30] sm:$0xf]
    %v1971 = vld [vmem:[#allocation7 + $0x34] sm:$0xf]
    %v1972 = vld [vmem:[#allocation7 + $0x38] sm:$0xf]
    %v1973 = vld [vmem:[#allocation7 + $0x3c] sm:$0xf]
    %v1974 = vld [vmem:[%s4] sm:$0x1]
    %v1976 = vlaneseq
    %v1977 = vshrl.u32 %v1976, 7
    %v1978 = vsub.s32 0, %v1977
    %v1979 = vrot.slane %v1974, %v1978
    %v1997 = vunpack.c.l.b16 %v1958
    %v1998 = vunpack.c.l.b16 %v1959
    %v1999 = vunpack.c.l.b16 %v1960
    %v2000 = vunpack.c.l.b16 %v1961
    %v2001 = vunpack.c.l.b16 %v1962
    %v2002 = vunpack.c.l.b16 %v1963
    %v2003 = vunpack.c.l.b16 %v1964
    %v2004 = vunpack.c.l.b16 %v1965
    %v2005 = vunpack.c.l.b16 %v1966
    %v2006 = vunpack.c.l.b16 %v1967
    %v2007 = vunpack.c.l.b16 %v1968
    %v2008 = vunpack.c.l.b16 %v1969
    %v2009 = vunpack.c.l.b16 %v1970
    %v2010 = vunpack.c.l.b16 %v1971
    %v2011 = vunpack.c.l.b16 %v1972
    %v2012 = vunpack.c.l.b16 %v1973
    %v2013 = vpack.c.b16 %v1998, %v1997
    %v2014 = vpack.c.b16 %v2000, %v1999
    %v2015 = vpack.c.b16 %v2002, %v2001
    %v2016 = vpack.c.b16 %v2004, %v2003
    %v2017 = vpack.c.b16 %v2006, %v2005
    %v2018 = vpack.c.b16 %v2008, %v2007
    %v2019 = vpack.c.b16 %v2010, %v2009
    %v2020 = vpack.c.b16 %v2012, %v2011
    %2029 = vmatprep.subr.bf16.mxu0 0
    %2030 = vmatpush1.bf16.msra.mxu0 %v2013
    %2031 = vmatprep.subr.bf16.mxu0 0
    %2032 = vmatpush1.bf16.msra.mxu0 %v2014
    %2033 = vmatprep.subr.bf16.mxu0 0
    %2034 = vmatpush1.bf16.msra.mxu0 %v2015
    %2035 = vmatprep.subr.bf16.mxu0 0
    %2036 = vmatpush1.bf16.msra.mxu0 %v2016
    %2037 = vmatprep.subr.bf16.mxu0 0
    %2038 = vmatpush1.bf16.msra.mxu0 %v2017
    %2039 = vmatprep.subr.bf16.mxu0 0
    %2040 = vmatpush1.bf16.msra.mxu0 %v2018
    %2041 = vmatprep.subr.bf16.mxu0 0
    %2042 = vmatpush1.bf16.msra.mxu0 %v2019
    %2043 = vmatprep.subr.bf16.mxu0 0
    %2044 = vmatpush1.bf16.msra.mxu0 %v2020
    %2045 = vmatprep.subr.bf16.mxu0 0
    %2046 = vmatpush1.bf16.msra.mxu0 0
    %2047 = vmatprep.subr.bf16.mxu0 0
    %2048 = vmatpush1.bf16.msra.mxu0 0
    %2049 = vmatprep.subr.bf16.mxu0 0
    %2050 = vmatpush1.bf16.msra.mxu0 0
    %2051 = vmatprep.subr.bf16.mxu0 0
    %2052 = vmatpush1.bf16.msra.mxu0 0
    %2053 = vmatprep.subr.bf16.mxu0 0
    %2054 = vmatpush1.bf16.msra.mxu0 0
    %2055 = vmatprep.subr.bf16.mxu0 0
    %2056 = vmatpush1.bf16.msra.mxu0 0
    %2057 = vmatprep.subr.bf16.mxu0 0
    %2058 = vmatpush1.bf16.msra.mxu0 0
    %2059 = vmatprep.subr.bf16.mxu0 0
    %2060 = vmatpush1.bf16.msra.mxu0 0
    %2061 = vmatprep.mubr.bf16.mxu0 0
    %2062 = vmatmul.mubr.bf16.gmra.mrb[0].mxu0 %v1957
    %v2063 = vpop.f32.mrb[0].mxu0
    %v2064 = vadd.f32 %v1979, %v2063
    %v2065 = vpop.f32.mrb[0].mxu0
    %v2066 = vpop.f32.mrb[0].mxu0
    %v2067 = vpop.f32.mrb[0].mxu0
    %2068 = vdwg.mxu0
    %2069 = vst [vmem:[#allocation8] sm:$0xff] %v2064
    // Predicated region
    $region34: #{mlp_forward_packed.1} parent=1 // pred_check
      _
    $region35: #{mlp_forward_packed.1} parent=1 // pred_check_branch
      %2071 = sbr.rel (0) target = $region37
    $region36: #{mlp_forward_packed.1} parent=1 // pred_region
      %s2073 = ssub.s32 128, 128
      %2074 = vsyncadd [#allocation4], %s2073
      %s2076 = sshll.u32 [#allocation8], 4
      %s2077 = int_to_ptr.vmem [resolvable:$true] %s2076
      %2079 = dma.vmem_to_hbm [thread:$0]  %s2077, 128, %s5, [#allocation4]
    $region37: #{mlp_forward_packed.1} parent=1 // pred_fallthru
      _
    // Predicated region
    $region38: #{mlp_forward_packed.1} parent=1 // pred_check
      _
    $region39: #{mlp_forward_packed.1} parent=1 // pred_check_branch
      %2081 = sbr.rel (0) target = $region41
    $region40: #{mlp_forward_packed.1} parent=1 // pred_region
      %2082 = dma.done [#allocation4], 128
    $region41: #{mlp_forward_packed.1} parent=1 // pred_fallthru
      _
    %2083 = vsyncpa [#allocation3], 1
    %2084 = vsyncpa [#allocation6], 1
    %2085 = vsyncpa [#allocation4], 1

</llo_original>
